<compile_context>
chip_gen: v7x
topology: tpu7x:2x2x1
jax: 0.10.0
libtpu: 0.0.40
codegen_flags: <defaults>
</compile_context>

<pallas_src>
import math
import functools

import jax
import jax.numpy as jnp
from jax import lax
from jax.experimental import pallas as pl
from jax.experimental.pallas import tpu as pltpu


def _cross_attn_kernel(x_ref, enc_ref, wq_ref, bq_ref, wk_ref, bk_ref,
                       wv_ref, bv_ref, wp_ref, bp_ref, y_ref, att_ref, *,
                       batch, seq_q, seq_kv, n_head, head_dim, matmul_dtype):
    """Fused whole-batch cross attention.

    x_ref   : (B*T,   C)        enc_ref : (B*T_E, C_E)
    wq_ref  : (C, C)            wk_ref/wv_ref : (C_E, C)     wp_ref : (C, C)
    bq/bk/bv/bp : (1, C) f32
    y_ref   : (B*T, C)          att_ref : (B*T, T_E)   (mean over heads)
    Weights and activations arrive already cast to `matmul_dtype` (wrapper side);
    only in-kernel intermediates are cast here.
    """
    def cast(a):
        return a if matmul_dtype is None else a.astype(matmul_dtype)

    def mm(a, b):
        return jnp.dot(a, b, preferred_element_type=jnp.float32)

    def mm_nt(a, b):
        # (M, K) x (N, K), contracting on the last dims (no explicit transpose).
        return lax.dot_general(a, b, (((1,), (1,)), ((), ())),
                               preferred_element_type=jnp.float32)

    x = x_ref[...]
    enc = enc_ref[...]
    scale = 1.0 / math.sqrt(head_dim)

    # Whole-batch, full-width projections: one MXU matmul each (f32 accumulation).
    # Scale hoisted onto q: scale * (q @ k^T) == (scale * q) @ k^T.
    q = cast((mm(x, wq_ref[...]) + bq_ref[...]) * scale)     # (B*T,   C)
    k = cast(mm(enc, wk_ref[...]) + bk_ref[...])             # (B*T_E, C)
    v = cast(mm(enc, wv_ref[...]) + bv_ref[...])             # (B*T_E, C)

    T, TE, hd = seq_q, seq_kv, head_dim
    inv_heads = 1.0 / n_head

    # Static unrolled (batch, head) loops — fine at toy shapes (see TODOs above).
    y_rows = []
    att_rows = []
    for b in range(batch):
        qb = q[b * T:(b + 1) * T, :]          # (T,   C)
        kb = k[b * TE:(b + 1) * TE, :]        # (T_E, C)
        vb = v[b * TE:(b + 1) * TE, :]        # (T_E, C)
        att_sum = jnp.zeros((T, TE), jnp.float32)
        head_outs = []
        for h in range(n_head):
            lo = h * hd
            hi = lo + hd
            s = mm_nt(qb[:, lo:hi], kb[:, lo:hi])            # (T, T_E) f32
            s = s - jnp.max(s, axis=-1, keepdims=True)
            p = jnp.exp(s)                                   # f32 elementwise (v5e-safe)
            # Softmax denominator via EUP approx reciprocal (free co-issue slot).
            p = p * pl.reciprocal(jnp.sum(p, axis=-1, keepdims=True), approx=True)
            # attn_drop: identity (eval mode).
            att_sum = att_sum + p
            head_outs.append(mm(cast(p), vb[:, lo:hi]))      # (T, hd) f32, stays in vregs
        y_rows.append(jnp.concatenate(head_outs, axis=-1))   # (T, C)
        att_rows.append(att_sum * inv_heads)

    # Single whole-batch output projection (K = C) + lane-dense slab stores.
    # resid_drop: identity (eval mode).
    y_cat = jnp.concatenate(y_rows, axis=0)                  # (B*T, C)
    y = mm(cast(y_cat), wp_ref[...]) + bp_ref[...]
    y_ref[...] = y.astype(y_ref.dtype)
    att_ref[...] = jnp.concatenate(att_rows, axis=0).astype(att_ref.dtype)


def cross_attention(x, encoder_output, params, n_head, matmul_dtype=None):
    """CrossAttention forward (eval mode, mask=None).

    matmul_dtype=jnp.bfloat16 uses bf16 MXU operands with f32 accumulation
    (valid on v5e / v6e / v7x); outputs stay in x.dtype / f32.
    """
    B, T, C = x.shape
    _, T_E, C_E = encoder_output.shape
    assert C % n_head == 0
    hd = C // n_head
    out_dtype = x.dtype

    x2 = x.reshape(B * T, C)
    enc2 = encoder_output.reshape(B * T_E, C_E)
    wq, wk, wv, wp = params["wq"], params["wk"], params["wv"], params["wp"]
    if matmul_dtype is not None:
        # Pre-cast weights + activations outside the kernel: halves DMA bytes and
        # resident VMEM, removes per-call VPU cast work on weight operands.
        x2, enc2 = x2.astype(matmul_dtype), enc2.astype(matmul_dtype)
        wq, wk, wv, wp = (w.astype(matmul_dtype) for w in (wq, wk, wv, wp))
    bq = params["bq"].reshape(1, C).astype(jnp.float32)
    bk = params["bk"].reshape(1, C).astype(jnp.float32)
    bv = params["bv"].reshape(1, C).astype(jnp.float32)
    bp = params["bp"].reshape(1, C).astype(jnp.float32)

    kernel = functools.partial(
        _cross_attn_kernel, batch=B, seq_q=T, seq_kv=T_E, n_head=n_head,
        head_dim=hd, matmul_dtype=matmul_dtype)

    def full(shape):
        return pl.BlockSpec(shape, lambda i: (0, 0))

    y2, att2 = pl.pallas_call(
        kernel,
        out_shape=(
            jax.ShapeDtypeStruct((B * T, C), out_dtype),
            jax.ShapeDtypeStruct((B * T, T_E), jnp.float32),
        ),
        grid_spec=pltpu.PrefetchScalarGridSpec(
            num_scalar_prefetch=0,
            grid=(1,),                          # single step: whole-batch matmuls
            in_specs=[
                full((B * T, C)),               # x slab
                full((B * T_E, C_E)),           # encoder_output slab
                full((C, C)),                   # Wq
                full((1, C)),                   # bq
                full((C_E, C)),                 # Wk
                full((1, C)),                   # bk
                full((C_E, C)),                 # Wv
                full((1, C)),                   # bv
                full((C, C)),                   # Wp (proj)
                full((1, C)),                   # bp
            ],
            out_specs=[
                full((B * T, C)),               # y slab (single lane-dense store)
                full((B * T, T_E)),             # head-mean att slab
            ],
        ),
        compiler_params=pltpu.CompilerParams(
            dimension_semantics=("arbitrary",)),
    )(x2, enc2, wq, bq, wk, bk, wv, bv, wp, bp)

    return y2.reshape(B, T, C), att2.reshape(B, T, T_E)


def _reference(x, enc, params, n_head):
    """Pure-JAX reference of the PyTorch forward (mask=None, eval mode)."""
    B, T, C = x.shape
    _, T_E, C_E = enc.shape
    hd = C // n_head
    q = (x @ params["wq"] + params["bq"]).reshape(B, T, n_head, hd).transpose(0, 2, 1, 3)
    k = (enc @ params["wk"] + params["bk"]).reshape(B, T_E, n_head, hd).transpose(0, 2, 1, 3)
    v = (enc @ params["wv"] + params["bv"]).reshape(B, T_E, n_head, hd).transpose(0, 2, 1, 3)
    att = jnp.einsum("bhqd,bhkd->bhqk", q, k) * (1.0 / math.sqrt(hd))
    att = jax.nn.softmax(att, axis=-1)
    y = jnp.einsum("bhqk,bhkd->bhqd", att, v)
    y = y.transpose(0, 2, 1, 3).reshape(B, T, C)
    y = y @ params["wp"] + params["bp"]
    return y, att.mean(axis=1)


if __name__ == "__main__":
    B, T, T_E = 2, 8, 16
    n_embd, condition_embd, n_head = 32, 48, 4

    key = jax.random.PRNGKey(0)
    ks = jax.random.split(key, 10)
    scale = 0.05
    params = {
        "wq": scale * jax.random.normal(ks[0], (n_embd, n_embd), jnp.float32),
        "bq": scale * jax.random.normal(ks[1], (n_embd,), jnp.float32),
        "wk": scale * jax.random.normal(ks[2], (condition_embd, n_embd), jnp.float32),
        "bk": scale * jax.random.normal(ks[3], (n_embd,), jnp.float32),
        "wv": scale * jax.random.normal(ks[4], (condition_embd, n_embd), jnp.float32),
        "bv": scale * jax.random.normal(ks[5], (n_embd,), jnp.float32),
        "wp": scale * jax.random.normal(ks[6], (n_embd, n_embd), jnp.float32),
        "bp": scale * jax.random.normal(ks[7], (n_embd,), jnp.float32),
    }

    x = jax.random.normal(ks[8], (B, T, n_embd), jnp.float32)
    enc = jax.random.normal(ks[9], (B, T_E, condition_embd), jnp.float32)

    y_ref, att_ref = _reference(x, enc, params, n_head)

    # f32 MXU path (default).
    y, att = cross_attention(x, enc, params, n_head)
    jax.block_until_ready((y, att))
    assert y.shape == (B, T, n_embd) and att.shape == (B, T, T_E)
    assert jnp.allclose(y, y_ref, atol=1e-2, rtol=1e-2)
    assert jnp.allclose(att, att_ref, atol=1e-2, rtol=1e-2)

    # bf16 MXU operands (all TPU generations), f32 accumulation — looser check.
    y_bf, att_bf = cross_attention(x, enc, params, n_head, matmul_dtype=jnp.bfloat16)
    jax.block_until_ready((y_bf, att_bf))
    assert jnp.allclose(y_bf, y_ref, atol=5e-2, rtol=5e-2)
    assert jnp.allclose(att_bf, att_ref, atol=5e-2, rtol=5e-2)

    print("KERNEL_OK")
</pallas_src>

<mosaic_0001>
module attributes {stable_mosaic.version = 11 : i64} {
  func.func @_cross_attn_kernel(%arg0: i32, %arg1: memref<16x32xf32, #tpu.memory_space<vmem>>, %arg2: memref<32x48xf32, #tpu.memory_space<vmem>>, %arg3: memref<32x32xf32, #tpu.memory_space<vmem>>, %arg4: memref<1x32xf32, #tpu.memory_space<vmem>>, %arg5: memref<48x32xf32, #tpu.memory_space<vmem>>, %arg6: memref<1x32xf32, #tpu.memory_space<vmem>>, %arg7: memref<48x32xf32, #tpu.memory_space<vmem>>, %arg8: memref<1x32xf32, #tpu.memory_space<vmem>>, %arg9: memref<32x32xf32, #tpu.memory_space<vmem>>, %arg10: memref<1x32xf32, #tpu.memory_space<vmem>>, %arg11: memref<16x32xf32, #tpu.memory_space<vmem>>, %arg12: memref<16x16xf32, #tpu.memory_space<vmem>>) attributes {dimension_semantics = [#tpu.dimension_semantics<arbitrary>], iteration_bounds = array<i64: 1>, scalar_prefetch = 0 : i64, scratch_operands = 0 : i64, tpu.core_type = #tpu.core_type<tc>, window_params = [{pipeline_mode = #tpu.pipeline_mode<synchronous>, transform_indices = @transform_0, window_bounds = array<i64: 16, 32>}, {pipeline_mode = #tpu.pipeline_mode<synchronous>, transform_indices = @transform_1, window_bounds = array<i64: 32, 48>}, {pipeline_mode = #tpu.pipeline_mode<synchronous>, transform_indices = @transform_2, window_bounds = array<i64: 32, 32>}, {pipeline_mode = #tpu.pipeline_mode<synchronous>, transform_indices = @transform_3, window_bounds = array<i64: 1, 32>}, {pipeline_mode = #tpu.pipeline_mode<synchronous>, transform_indices = @transform_4, window_bounds = array<i64: 48, 32>}, {pipeline_mode = #tpu.pipeline_mode<synchronous>, transform_indices = @transform_5, window_bounds = array<i64: 1, 32>}, {pipeline_mode = #tpu.pipeline_mode<synchronous>, transform_indices = @transform_6, window_bounds = array<i64: 48, 32>}, {pipeline_mode = #tpu.pipeline_mode<synchronous>, transform_indices = @transform_7, window_bounds = array<i64: 1, 32>}, {pipeline_mode = #tpu.pipeline_mode<synchronous>, transform_indices = @transform_8, window_bounds = array<i64: 32, 32>}, {pipeline_mode = #tpu.pipeline_mode<synchronous>, transform_indices = @transform_9, window_bounds = array<i64: 1, 32>}, {pipeline_mode = #tpu.pipeline_mode<synchronous>, transform_indices = @transform_10, window_bounds = array<i64: 16, 32>}, {pipeline_mode = #tpu.pipeline_mode<synchronous>, transform_indices = @transform_11, window_bounds = array<i64: 16, 16>}]} {
    %c0 = arith.constant 0 : index
    %c0_0 = arith.constant 0 : index
    %0 = vector.load %arg1[%c0, %c0_0] : memref<16x32xf32, #tpu.memory_space<vmem>>, vector<16x32xf32>
    %c0_1 = arith.constant 0 : index
    %c0_2 = arith.constant 0 : index
    %1 = vector.load %arg2[%c0_1, %c0_2] : memref<32x48xf32, #tpu.memory_space<vmem>>, vector<32x48xf32>
    %c0_3 = arith.constant 0 : index
    %c0_4 = arith.constant 0 : index
    %2 = vector.load %arg3[%c0_3, %c0_4] : memref<32x32xf32, #tpu.memory_space<vmem>>, vector<32x32xf32>
    %cst = arith.constant dense<0.000000e+00> : vector<16x32xf32>
    %3 = tpu.matmul %0, %2, %cst {dimension_numbers = #tpu.dot_dimension_numbers<[1], [0], [0], [1], [0, 0, 1, 1], [], []>} : vector<16x32xf32>, vector<32x32xf32>, vector<16x32xf32> -> vector<16x32xf32>
    %c0_5 = arith.constant 0 : index
    %c0_6 = arith.constant 0 : index
    %4 = vector.load %arg4[%c0_5, %c0_6] : memref<1x32xf32, #tpu.memory_space<vmem>>, vector<1x32xf32>
    %5 = vector.broadcast %4 : vector<1x32xf32> to vector<16x32xf32>
    %6 = arith.addf %3, %5 : vector<16x32xf32>
    %cst_7 = arith.constant 0.353553385 : f32
    %7 = vector.broadcast %cst_7 : f32 to vector<16x32xf32>
    %8 = arith.mulf %6, %7 : vector<16x32xf32>
    %c0_8 = arith.constant 0 : index
    %c0_9 = arith.constant 0 : index
    %9 = vector.load %arg5[%c0_8, %c0_9] : memref<48x32xf32, #tpu.memory_space<vmem>>, vector<48x32xf32>
    %cst_10 = arith.constant dense<0.000000e+00> : vector<32x32xf32>
    %10 = tpu.matmul %1, %9, %cst_10 {dimension_numbers = #tpu.dot_dimension_numbers<[1], [0], [0], [1], [0, 0, 1, 1], [], []>} : vector<32x48xf32>, vector<48x32xf32>, vector<32x32xf32> -> vector<32x32xf32>
    %c0_11 = arith.constant 0 : index
    %c0_12 = arith.constant 0 : index
    %11 = vector.load %arg6[%c0_11, %c0_12] : memref<1x32xf32, #tpu.memory_space<vmem>>, vector<1x32xf32>
    %12 = vector.broadcast %11 : vector<1x32xf32> to vector<32x32xf32>
    %13 = arith.addf %10, %12 : vector<32x32xf32>
    %c0_13 = arith.constant 0 : index
    %c0_14 = arith.constant 0 : index
    %14 = vector.load %arg7[%c0_13, %c0_14] : memref<48x32xf32, #tpu.memory_space<vmem>>, vector<48x32xf32>
    %cst_15 = arith.constant dense<0.000000e+00> : vector<32x32xf32>
    %15 = tpu.matmul %1, %14, %cst_15 {dimension_numbers = #tpu.dot_dimension_numbers<[1], [0], [0], [1], [0, 0, 1, 1], [], []>} : vector<32x48xf32>, vector<48x32xf32>, vector<32x32xf32> -> vector<32x32xf32>
    %c0_16 = arith.constant 0 : index
    %c0_17 = arith.constant 0 : index
    %16 = vector.load %arg8[%c0_16, %c0_17] : memref<1x32xf32, #tpu.memory_space<vmem>>, vector<1x32xf32>
    %17 = vector.broadcast %16 : vector<1x32xf32> to vector<32x32xf32>
    %18 = arith.addf %15, %17 : vector<32x32xf32>
    %19 = vector.extract_strided_slice %8 {offsets = [0, 0], sizes = [8, 32], strides = [1, 1]} : vector<16x32xf32> to vector<8x32xf32>
    %20 = vector.extract_strided_slice %13 {offsets = [0, 0], sizes = [16, 32], strides = [1, 1]} : vector<32x32xf32> to vector<16x32xf32>
    %21 = vector.extract_strided_slice %18 {offsets = [0, 0], sizes = [16, 32], strides = [1, 1]} : vector<32x32xf32> to vector<16x32xf32>
    %cst_18 = arith.constant 0.000000e+00 : f32
    %22 = vector.broadcast %cst_18 : f32 to vector<8x16xf32>
    %23 = vector.extract_strided_slice %19 {offsets = [0, 0], sizes = [8, 8], strides = [1, 1]} : vector<8x32xf32> to vector<8x8xf32>
    %24 = vector.extract_strided_slice %20 {offsets = [0, 0], sizes = [16, 8], strides = [1, 1]} : vector<16x32xf32> to vector<16x8xf32>
    %cst_19 = arith.constant dense<0.000000e+00> : vector<8x16xf32>
    %25 = tpu.matmul %23, %24, %cst_19 {dimension_numbers = #tpu.dot_dimension_numbers<[1], [1], [0], [0], [0, 0, 1, 0], [], []>} : vector<8x8xf32>, vector<16x8xf32>, vector<8x16xf32> -> vector<8x16xf32>
    %cst_20 = arith.constant dense<0xFF800000> : vector<8xf32>
    %26 = vector.multi_reduction <maximumf>, %25, %cst_20 [1] : vector<8x16xf32> to vector<8xf32>
    %27 = vector.shape_cast %26 : vector<8xf32> to vector<8x1xf32>
    %28 = vector.broadcast %27 : vector<8x1xf32> to vector<8x16xf32>
    %29 = arith.subf %25, %28 : vector<8x16xf32>
    %30 = math.exp %29 : vector<8x16xf32>
    %cst_21 = arith.constant dense<0.000000e+00> : vector<8xf32>
    %31 = vector.multi_reduction <add>, %30, %cst_21 [1] : vector<8x16xf32> to vector<8xf32>
    %32 = vector.shape_cast %31 : vector<8xf32> to vector<8x1xf32>
    %33 = tpu.reciprocal %32 {approx = true} : vector<8x1xf32> -> vector<8x1xf32>
    %34 = vector.broadcast %33 : vector<8x1xf32> to vector<8x16xf32>
    %35 = arith.mulf %30, %34 : vector<8x16xf32>
    %36 = arith.addf %22, %35 : vector<8x16xf32>
    %37 = vector.extract_strided_slice %21 {offsets = [0, 0], sizes = [16, 8], strides = [1, 1]} : vector<16x32xf32> to vector<16x8xf32>
    %cst_22 = arith.constant dense<0.000000e+00> : vector<8x8xf32>
    %38 = tpu.matmul %35, %37, %cst_22 {dimension_numbers = #tpu.dot_dimension_numbers<[1], [0], [0], [1], [0, 0, 1, 1], [], []>} : vector<8x16xf32>, vector<16x8xf32>, vector<8x8xf32> -> vector<8x8xf32>
    %39 = vector.extract_strided_slice %19 {offsets = [0, 8], sizes = [8, 8], strides = [1, 1]} : vector<8x32xf32> to vector<8x8xf32>
    %40 = vector.extract_strided_slice %20 {offsets = [0, 8], sizes = [16, 8], strides = [1, 1]} : vector<16x32xf32> to vector<16x8xf32>
    %cst_23 = arith.constant dense<0.000000e+00> : vector<8x16xf32>
    %41 = tpu.matmul %39, %40, %cst_23 {dimension_numbers = #tpu.dot_dimension_numbers<[1], [1], [0], [0], [0, 0, 1, 0], [], []>} : vector<8x8xf32>, vector<16x8xf32>, vector<8x16xf32> -> vector<8x16xf32>
    %cst_24 = arith.constant dense<0xFF800000> : vector<8xf32>
    %42 = vector.multi_reduction <maximumf>, %41, %cst_24 [1] : vector<8x16xf32> to vector<8xf32>
    %43 = vector.shape_cast %42 : vector<8xf32> to vector<8x1xf32>
    %44 = vector.broadcast %43 : vector<8x1xf32> to vector<8x16xf32>
    %45 = arith.subf %41, %44 : vector<8x16xf32>
    %46 = math.exp %45 : vector<8x16xf32>
    %cst_25 = arith.constant dense<0.000000e+00> : vector<8xf32>
    %47 = vector.multi_reduction <add>, %46, %cst_25 [1] : vector<8x16xf32> to vector<8xf32>
    %48 = vector.shape_cast %47 : vector<8xf32> to vector<8x1xf32>
    %49 = tpu.reciprocal %48 {approx = true} : vector<8x1xf32> -> vector<8x1xf32>
    %50 = vector.broadcast %49 : vector<8x1xf32> to vector<8x16xf32>
    %51 = arith.mulf %46, %50 : vector<8x16xf32>
    %52 = arith.addf %36, %51 : vector<8x16xf32>
    %53 = vector.extract_strided_slice %21 {offsets = [0, 8], sizes = [16, 8], strides = [1, 1]} : vector<16x32xf32> to vector<16x8xf32>
    %cst_26 = arith.constant dense<0.000000e+00> : vector<8x8xf32>
    %54 = tpu.matmul %51, %53, %cst_26 {dimension_numbers = #tpu.dot_dimension_numbers<[1], [0], [0], [1], [0, 0, 1, 1], [], []>} : vector<8x16xf32>, vector<16x8xf32>, vector<8x8xf32> -> vector<8x8xf32>
    %55 = vector.extract_strided_slice %19 {offsets = [0, 16], sizes = [8, 8], strides = [1, 1]} : vector<8x32xf32> to vector<8x8xf32>
    %56 = vector.extract_strided_slice %20 {offsets = [0, 16], sizes = [16, 8], strides = [1, 1]} : vector<16x32xf32> to vector<16x8xf32>
    %cst_27 = arith.constant dense<0.000000e+00> : vector<8x16xf32>
    %57 = tpu.matmul %55, %56, %cst_27 {dimension_numbers = #tpu.dot_dimension_numbers<[1], [1], [0], [0], [0, 0, 1, 0], [], []>} : vector<8x8xf32>, vector<16x8xf32>, vector<8x16xf32> -> vector<8x16xf32>
    %cst_28 = arith.constant dense<0xFF800000> : vector<8xf32>
    %58 = vector.multi_reduction <maximumf>, %57, %cst_28 [1] : vector<8x16xf32> to vector<8xf32>
    %59 = vector.shape_cast %58 : vector<8xf32> to vector<8x1xf32>
    %60 = vector.broadcast %59 : vector<8x1xf32> to vector<8x16xf32>
    %61 = arith.subf %57, %60 : vector<8x16xf32>
    %62 = math.exp %61 : vector<8x16xf32>
    %cst_29 = arith.constant dense<0.000000e+00> : vector<8xf32>
    %63 = vector.multi_reduction <add>, %62, %cst_29 [1] : vector<8x16xf32> to vector<8xf32>
    %64 = vector.shape_cast %63 : vector<8xf32> to vector<8x1xf32>
    %65 = tpu.reciprocal %64 {approx = true} : vector<8x1xf32> -> vector<8x1xf32>
    %66 = vector.broadcast %65 : vector<8x1xf32> to vector<8x16xf32>
    %67 = arith.mulf %62, %66 : vector<8x16xf32>
    %68 = arith.addf %52, %67 : vector<8x16xf32>
    %69 = vector.extract_strided_slice %21 {offsets = [0, 16], sizes = [16, 8], strides = [1, 1]} : vector<16x32xf32> to vector<16x8xf32>
    %cst_30 = arith.constant dense<0.000000e+00> : vector<8x8xf32>
    %70 = tpu.matmul %67, %69, %cst_30 {dimension_numbers = #tpu.dot_dimension_numbers<[1], [0], [0], [1], [0, 0, 1, 1], [], []>} : vector<8x16xf32>, vector<16x8xf32>, vector<8x8xf32> -> vector<8x8xf32>
    %71 = vector.extract_strided_slice %19 {offsets = [0, 24], sizes = [8, 8], strides = [1, 1]} : vector<8x32xf32> to vector<8x8xf32>
    %72 = vector.extract_strided_slice %20 {offsets = [0, 24], sizes = [16, 8], strides = [1, 1]} : vector<16x32xf32> to vector<16x8xf32>
    %cst_31 = arith.constant dense<0.000000e+00> : vector<8x16xf32>
    %73 = tpu.matmul %71, %72, %cst_31 {dimension_numbers = #tpu.dot_dimension_numbers<[1], [1], [0], [0], [0, 0, 1, 0], [], []>} : vector<8x8xf32>, vector<16x8xf32>, vector<8x16xf32> -> vector<8x16xf32>
    %cst_32 = arith.constant dense<0xFF800000> : vector<8xf32>
    %74 = vector.multi_reduction <maximumf>, %73, %cst_32 [1] : vector<8x16xf32> to vector<8xf32>
    %75 = vector.shape_cast %74 : vector<8xf32> to vector<8x1xf32>
    %76 = vector.broadcast %75 : vector<8x1xf32> to vector<8x16xf32>
    %77 = arith.subf %73, %76 : vector<8x16xf32>
    %78 = math.exp %77 : vector<8x16xf32>
    %cst_33 = arith.constant dense<0.000000e+00> : vector<8xf32>
    %79 = vector.multi_reduction <add>, %78, %cst_33 [1] : vector<8x16xf32> to vector<8xf32>
    %80 = vector.shape_cast %79 : vector<8xf32> to vector<8x1xf32>
    %81 = tpu.reciprocal %80 {approx = true} : vector<8x1xf32> -> vector<8x1xf32>
    %82 = vector.broadcast %81 : vector<8x1xf32> to vector<8x16xf32>
    %83 = arith.mulf %78, %82 : vector<8x16xf32>
    %84 = arith.addf %68, %83 : vector<8x16xf32>
    %85 = vector.extract_strided_slice %21 {offsets = [0, 24], sizes = [16, 8], strides = [1, 1]} : vector<16x32xf32> to vector<16x8xf32>
    %cst_34 = arith.constant dense<0.000000e+00> : vector<8x8xf32>
    %86 = tpu.matmul %83, %85, %cst_34 {dimension_numbers = #tpu.dot_dimension_numbers<[1], [0], [0], [1], [0, 0, 1, 1], [], []>} : vector<8x16xf32>, vector<16x8xf32>, vector<8x8xf32> -> vector<8x8xf32>
    %87 = tpu.concatenate %38, %54, %70, %86 in 1 : vector<8x8xf32>, vector<8x8xf32>, vector<8x8xf32>, vector<8x8xf32> -> vector<8x32xf32>
    %cst_35 = arith.constant 2.500000e-01 : f32
    %88 = vector.broadcast %cst_35 : f32 to vector<8x16xf32>
    %89 = arith.mulf %84, %88 : vector<8x16xf32>
    %90 = vector.extract_strided_slice %8 {offsets = [8, 0], sizes = [8, 32], strides = [1, 1]} : vector<16x32xf32> to vector<8x32xf32>
    %91 = vector.extract_strided_slice %13 {offsets = [16, 0], sizes = [16, 32], strides = [1, 1]} : vector<32x32xf32> to vector<16x32xf32>
    %92 = vector.extract_strided_slice %18 {offsets = [16, 0], sizes = [16, 32], strides = [1, 1]} : vector<32x32xf32> to vector<16x32xf32>
    %cst_36 = arith.constant 0.000000e+00 : f32
    %93 = vector.broadcast %cst_36 : f32 to vector<8x16xf32>
    %94 = vector.extract_strided_slice %90 {offsets = [0, 0], sizes = [8, 8], strides = [1, 1]} : vector<8x32xf32> to vector<8x8xf32>
    %95 = vector.extract_strided_slice %91 {offsets = [0, 0], sizes = [16, 8], strides = [1, 1]} : vector<16x32xf32> to vector<16x8xf32>
    %cst_37 = arith.constant dense<0.000000e+00> : vector<8x16xf32>
    %96 = tpu.matmul %94, %95, %cst_37 {dimension_numbers = #tpu.dot_dimension_numbers<[1], [1], [0], [0], [0, 0, 1, 0], [], []>} : vector<8x8xf32>, vector<16x8xf32>, vector<8x16xf32> -> vector<8x16xf32>
    %cst_38 = arith.constant dense<0xFF800000> : vector<8xf32>
    %97 = vector.multi_reduction <maximumf>, %96, %cst_38 [1] : vector<8x16xf32> to vector<8xf32>
    %98 = vector.shape_cast %97 : vector<8xf32> to vector<8x1xf32>
    %99 = vector.broadcast %98 : vector<8x1xf32> to vector<8x16xf32>
    %100 = arith.subf %96, %99 : vector<8x16xf32>
    %101 = math.exp %100 : vector<8x16xf32>
    %cst_39 = arith.constant dense<0.000000e+00> : vector<8xf32>
    %102 = vector.multi_reduction <add>, %101, %cst_39 [1] : vector<8x16xf32> to vector<8xf32>
    %103 = vector.shape_cast %102 : vector<8xf32> to vector<8x1xf32>
    %104 = tpu.reciprocal %103 {approx = true} : vector<8x1xf32> -> vector<8x1xf32>
    %105 = vector.broadcast %104 : vector<8x1xf32> to vector<8x16xf32>
    %106 = arith.mulf %101, %105 : vector<8x16xf32>
    %107 = arith.addf %93, %106 : vector<8x16xf32>
    %108 = vector.extract_strided_slice %92 {offsets = [0, 0], sizes = [16, 8], strides = [1, 1]} : vector<16x32xf32> to vector<16x8xf32>
    %cst_40 = arith.constant dense<0.000000e+00> : vector<8x8xf32>
    %109 = tpu.matmul %106, %108, %cst_40 {dimension_numbers = #tpu.dot_dimension_numbers<[1], [0], [0], [1], [0, 0, 1, 1], [], []>} : vector<8x16xf32>, vector<16x8xf32>, vector<8x8xf32> -> vector<8x8xf32>
    %110 = vector.extract_strided_slice %90 {offsets = [0, 8], sizes = [8, 8], strides = [1, 1]} : vector<8x32xf32> to vector<8x8xf32>
    %111 = vector.extract_strided_slice %91 {offsets = [0, 8], sizes = [16, 8], strides = [1, 1]} : vector<16x32xf32> to vector<16x8xf32>
    %cst_41 = arith.constant dense<0.000000e+00> : vector<8x16xf32>
    %112 = tpu.matmul %110, %111, %cst_41 {dimension_numbers = #tpu.dot_dimension_numbers<[1], [1], [0], [0], [0, 0, 1, 0], [], []>} : vector<8x8xf32>, vector<16x8xf32>, vector<8x16xf32> -> vector<8x16xf32>
    %cst_42 = arith.constant dense<0xFF800000> : vector<8xf32>
    %113 = vector.multi_reduction <maximumf>, %112, %cst_42 [1] : vector<8x16xf32> to vector<8xf32>
    %114 = vector.shape_cast %113 : vector<8xf32> to vector<8x1xf32>
    %115 = vector.broadcast %114 : vector<8x1xf32> to vector<8x16xf32>
    %116 = arith.subf %112, %115 : vector<8x16xf32>
    %117 = math.exp %116 : vector<8x16xf32>
    %cst_43 = arith.constant dense<0.000000e+00> : vector<8xf32>
    %118 = vector.multi_reduction <add>, %117, %cst_43 [1] : vector<8x16xf32> to vector<8xf32>
    %119 = vector.shape_cast %118 : vector<8xf32> to vector<8x1xf32>
    %120 = tpu.reciprocal %119 {approx = true} : vector<8x1xf32> -> vector<8x1xf32>
    %121 = vector.broadcast %120 : vector<8x1xf32> to vector<8x16xf32>
    %122 = arith.mulf %117, %121 : vector<8x16xf32>
    %123 = arith.addf %107, %122 : vector<8x16xf32>
    %124 = vector.extract_strided_slice %92 {offsets = [0, 8], sizes = [16, 8], strides = [1, 1]} : vector<16x32xf32> to vector<16x8xf32>
    %cst_44 = arith.constant dense<0.000000e+00> : vector<8x8xf32>
    %125 = tpu.matmul %122, %124, %cst_44 {dimension_numbers = #tpu.dot_dimension_numbers<[1], [0], [0], [1], [0, 0, 1, 1], [], []>} : vector<8x16xf32>, vector<16x8xf32>, vector<8x8xf32> -> vector<8x8xf32>
    %126 = vector.extract_strided_slice %90 {offsets = [0, 16], sizes = [8, 8], strides = [1, 1]} : vector<8x32xf32> to vector<8x8xf32>
    %127 = vector.extract_strided_slice %91 {offsets = [0, 16], sizes = [16, 8], strides = [1, 1]} : vector<16x32xf32> to vector<16x8xf32>
    %cst_45 = arith.constant dense<0.000000e+00> : vector<8x16xf32>
    %128 = tpu.matmul %126, %127, %cst_45 {dimension_numbers = #tpu.dot_dimension_numbers<[1], [1], [0], [0], [0, 0, 1, 0], [], []>} : vector<8x8xf32>, vector<16x8xf32>, vector<8x16xf32> -> vector<8x16xf32>
    %cst_46 = arith.constant dense<0xFF800000> : vector<8xf32>
    %129 = vector.multi_reduction <maximumf>, %128, %cst_46 [1] : vector<8x16xf32> to vector<8xf32>
    %130 = vector.shape_cast %129 : vector<8xf32> to vector<8x1xf32>
    %131 = vector.broadcast %130 : vector<8x1xf32> to vector<8x16xf32>
    %132 = arith.subf %128, %131 : vector<8x16xf32>
    %133 = math.exp %132 : vector<8x16xf32>
    %cst_47 = arith.constant dense<0.000000e+00> : vector<8xf32>
    %134 = vector.multi_reduction <add>, %133, %cst_47 [1] : vector<8x16xf32> to vector<8xf32>
    %135 = vector.shape_cast %134 : vector<8xf32> to vector<8x1xf32>
    %136 = tpu.reciprocal %135 {approx = true} : vector<8x1xf32> -> vector<8x1xf32>
    %137 = vector.broadcast %136 : vector<8x1xf32> to vector<8x16xf32>
    %138 = arith.mulf %133, %137 : vector<8x16xf32>
    %139 = arith.addf %123, %138 : vector<8x16xf32>
    %140 = vector.extract_strided_slice %92 {offsets = [0, 16], sizes = [16, 8], strides = [1, 1]} : vector<16x32xf32> to vector<16x8xf32>
    %cst_48 = arith.constant dense<0.000000e+00> : vector<8x8xf32>
    %141 = tpu.matmul %138, %140, %cst_48 {dimension_numbers = #tpu.dot_dimension_numbers<[1], [0], [0], [1], [0, 0, 1, 1], [], []>} : vector<8x16xf32>, vector<16x8xf32>, vector<8x8xf32> -> vector<8x8xf32>
    %142 = vector.extract_strided_slice %90 {offsets = [0, 24], sizes = [8, 8], strides = [1, 1]} : vector<8x32xf32> to vector<8x8xf32>
    %143 = vector.extract_strided_slice %91 {offsets = [0, 24], sizes = [16, 8], strides = [1, 1]} : vector<16x32xf32> to vector<16x8xf32>
    %cst_49 = arith.constant dense<0.000000e+00> : vector<8x16xf32>
    %144 = tpu.matmul %142, %143, %cst_49 {dimension_numbers = #tpu.dot_dimension_numbers<[1], [1], [0], [0], [0, 0, 1, 0], [], []>} : vector<8x8xf32>, vector<16x8xf32>, vector<8x16xf32> -> vector<8x16xf32>
    %cst_50 = arith.constant dense<0xFF800000> : vector<8xf32>
    %145 = vector.multi_reduction <maximumf>, %144, %cst_50 [1] : vector<8x16xf32> to vector<8xf32>
    %146 = vector.shape_cast %145 : vector<8xf32> to vector<8x1xf32>
    %147 = vector.broadcast %146 : vector<8x1xf32> to vector<8x16xf32>
    %148 = arith.subf %144, %147 : vector<8x16xf32>
    %149 = math.exp %148 : vector<8x16xf32>
    %cst_51 = arith.constant dense<0.000000e+00> : vector<8xf32>
    %150 = vector.multi_reduction <add>, %149, %cst_51 [1] : vector<8x16xf32> to vector<8xf32>
    %151 = vector.shape_cast %150 : vector<8xf32> to vector<8x1xf32>
    %152 = tpu.reciprocal %151 {approx = true} : vector<8x1xf32> -> vector<8x1xf32>
    %153 = vector.broadcast %152 : vector<8x1xf32> to vector<8x16xf32>
    %154 = arith.mulf %149, %153 : vector<8x16xf32>
    %155 = arith.addf %139, %154 : vector<8x16xf32>
    %156 = vector.extract_strided_slice %92 {offsets = [0, 24], sizes = [16, 8], strides = [1, 1]} : vector<16x32xf32> to vector<16x8xf32>
    %cst_52 = arith.constant dense<0.000000e+00> : vector<8x8xf32>
    %157 = tpu.matmul %154, %156, %cst_52 {dimension_numbers = #tpu.dot_dimension_numbers<[1], [0], [0], [1], [0, 0, 1, 1], [], []>} : vector<8x16xf32>, vector<16x8xf32>, vector<8x8xf32> -> vector<8x8xf32>
    %158 = tpu.concatenate %109, %125, %141, %157 in 1 : vector<8x8xf32>, vector<8x8xf32>, vector<8x8xf32>, vector<8x8xf32> -> vector<8x32xf32>
    %cst_53 = arith.constant 2.500000e-01 : f32
    %159 = vector.broadcast %cst_53 : f32 to vector<8x16xf32>
    %160 = arith.mulf %155, %159 : vector<8x16xf32>
    %161 = tpu.concatenate %87, %158 in 0 : vector<8x32xf32>, vector<8x32xf32> -> vector<16x32xf32>
    %c0_54 = arith.constant 0 : index
    %c0_55 = arith.constant 0 : index
    %162 = vector.load %arg9[%c0_54, %c0_55] : memref<32x32xf32, #tpu.memory_space<vmem>>, vector<32x32xf32>
    %cst_56 = arith.constant dense<0.000000e+00> : vector<16x32xf32>
    %163 = tpu.matmul %161, %162, %cst_56 {dimension_numbers = #tpu.dot_dimension_numbers<[1], [0], [0], [1], [0, 0, 1, 1], [], []>} : vector<16x32xf32>, vector<32x32xf32>, vector<16x32xf32> -> vector<16x32xf32>
    %c0_57 = arith.constant 0 : index
    %c0_58 = arith.constant 0 : index
    %164 = vector.load %arg10[%c0_57, %c0_58] : memref<1x32xf32, #tpu.memory_space<vmem>>, vector<1x32xf32>
    %165 = vector.broadcast %164 : vector<1x32xf32> to vector<16x32xf32>
    %166 = arith.addf %163, %165 : vector<16x32xf32>
    %c0_59 = arith.constant 0 : index
    %c0_60 = arith.constant 0 : index
    %167 = vector.load %arg11[%c0_59, %c0_60] : memref<16x32xf32, #tpu.memory_space<vmem>>, vector<16x32xf32>
    tpu.vector_store %arg11[%c0_59, %c0_60], %166 {strides = array<i32>} : memref<16x32xf32, #tpu.memory_space<vmem>>, vector<16x32xf32>,
    %168 = tpu.concatenate %89, %160 in 0 : vector<8x16xf32>, vector<8x16xf32> -> vector<16x16xf32>
    %c0_61 = arith.constant 0 : index
    %c0_62 = arith.constant 0 : index
    %169 = vector.load %arg12[%c0_61, %c0_62] : memref<16x16xf32, #tpu.memory_space<vmem>>, vector<16x16xf32>
    tpu.vector_store %arg12[%c0_61, %c0_62], %168 {strides = array<i32>} : memref<16x16xf32, #tpu.memory_space<vmem>>, vector<16x16xf32>,
    return
  }
  func.func @transform_0(%arg0: i32) -> (i32, i32) {
    %c0_i32 = arith.constant 0 : i32
    %c0_i32_0 = arith.constant 0 : i32
    %c0_i32_1 = arith.constant 0 : i32
    return %c0_i32, %c0_i32_0 : i32, i32
  }
  func.func @transform_1(%arg0: i32) -> (i32, i32) {
    %c0_i32 = arith.constant 0 : i32
    %c0_i32_0 = arith.constant 0 : i32
    %c0_i32_1 = arith.constant 0 : i32
    return %c0_i32, %c0_i32_0 : i32, i32
  }
  func.func @transform_2(%arg0: i32) -> (i32, i32) {
    %c0_i32 = arith.constant 0 : i32
    %c0_i32_0 = arith.constant 0 : i32
    %c0_i32_1 = arith.constant 0 : i32
    return %c0_i32, %c0_i32_0 : i32, i32
  }
  func.func @transform_3(%arg0: i32) -> (i32, i32) {
    %c0_i32 = arith.constant 0 : i32
    %c0_i32_0 = arith.constant 0 : i32
    %c0_i32_1 = arith.constant 0 : i32
    return %c0_i32, %c0_i32_0 : i32, i32
  }
  func.func @transform_4(%arg0: i32) -> (i32, i32) {
    %c0_i32 = arith.constant 0 : i32
    %c0_i32_0 = arith.constant 0 : i32
    %c0_i32_1 = arith.constant 0 : i32
    return %c0_i32, %c0_i32_0 : i32, i32
  }
  func.func @transform_5(%arg0: i32) -> (i32, i32) {
    %c0_i32 = arith.constant 0 : i32
    %c0_i32_0 = arith.constant 0 : i32
    %c0_i32_1 = arith.constant 0 : i32
    return %c0_i32, %c0_i32_0 : i32, i32
  }
  func.func @transform_6(%arg0: i32) -> (i32, i32) {
    %c0_i32 = arith.constant 0 : i32
    %c0_i32_0 = arith.constant 0 : i32
    %c0_i32_1 = arith.constant 0 : i32
    return %c0_i32, %c0_i32_0 : i32, i32
  }
  func.func @transform_7(%arg0: i32) -> (i32, i32) {
    %c0_i32 = arith.constant 0 : i32
    %c0_i32_0 = arith.constant 0 : i32
    %c0_i32_1 = arith.constant 0 : i32
    return %c0_i32, %c0_i32_0 : i32, i32
  }
  func.func @transform_8(%arg0: i32) -> (i32, i32) {
    %c0_i32 = arith.constant 0 : i32
    %c0_i32_0 = arith.constant 0 : i32
    %c0_i32_1 = arith.constant 0 : i32
    return %c0_i32, %c0_i32_0 : i32, i32
  }
  func.func @transform_9(%arg0: i32) -> (i32, i32) {
    %c0_i32 = arith.constant 0 : i32
    %c0_i32_0 = arith.constant 0 : i32
    %c0_i32_1 = arith.constant 0 : i32
    return %c0_i32, %c0_i32_0 : i32, i32
  }
  func.func @transform_10(%arg0: i32) -> (i32, i32) {
    %c0_i32 = arith.constant 0 : i32
    %c0_i32_0 = arith.constant 0 : i32
    %c0_i32_1 = arith.constant 0 : i32
    return %c0_i32, %c0_i32_0 : i32, i32
  }
  func.func @transform_11(%arg0: i32) -> (i32, i32) {
    %c0_i32 = arith.constant 0 : i32
    %c0_i32_0 = arith.constant 0 : i32
    %c0_i32_1 = arith.constant 0 : i32
    return %c0_i32, %c0_i32_0 : i32, i32
  }
}

</mosaic_0001>

<llo_original>
// kernel: tpu_custom_call.1
$region0: #{tpu_custom_call.1}
  #allocation0 [shape = 'u32[]', space=smem, size = 0x4, offset = 0x4, fixed_abs, tag = 'smem constant byte address 0x4 - core index']
  #allocation1 [shape = 'u32[144,128]{1,0:T(1,128)}', space=vmem, size = 0x12000, scoped, tag = 'internal scratch']
  %s0 = inlined_call_operand.vmem [shape: f32[16,32], index: 0, kind: input, shape index: {}]
  %s1 = inlined_call_operand.vmem [shape: f32[32,48], index: 1, kind: input, shape index: {}]
  %s2 = inlined_call_operand.vmem [shape: f32[32,32], index: 2, kind: input, shape index: {}]
  %s3 = inlined_call_operand.vmem [shape: f32[1,32], index: 3, kind: input, shape index: {}]
  %s4 = inlined_call_operand.vmem [shape: f32[48,32], index: 4, kind: input, shape index: {}]
  %s5 = inlined_call_operand.vmem [shape: f32[1,32], index: 5, kind: input, shape index: {}]
  %s6 = inlined_call_operand.vmem [shape: f32[48,32], index: 6, kind: input, shape index: {}]
  %s7 = inlined_call_operand.vmem [shape: f32[1,32], index: 7, kind: input, shape index: {}]
  %s8 = inlined_call_operand.vmem [shape: f32[32,32], index: 8, kind: input, shape index: {}]
  %s9 = inlined_call_operand.vmem [shape: f32[1,32], index: 9, kind: input, shape index: {}]
  %s10 = inlined_call_operand.hbm [shape: f32[16,32], index: 10, kind: output, shape index: {0}]
  %s11 = inlined_call_operand.hbm [shape: f32[16,16], index: 11, kind: output, shape index: {1}]
  %12 = xla_tuple %s10, %s11
  %s13 = sld [smem:[#allocation0]]
  $region58: #{tpu_custom_call.1} parent=0
    _
  %s15 = ssub.s32 1, %s13
  %s16 = scalar_select 0, %s15, %s13
  $region1: #{tpu_custom_call.1} parent=0
    #allocation2 [shape = 'u8[8192]{0}', space=vmem, size = 0x2000, scoped, tag = 'output window, operand 0, single buffered']
    #allocation3 [shape = 's32[1]{0}', space=sflag, size = 0x4, scoped, tag = 'scoped memory for tpu_custom_call.1']
    #allocation4 [shape = 'u8[8192]{0}', space=vmem, size = 0x2000, scoped, tag = 'output window, operand 1, single buffered']
    #allocation5 [shape = 's32[1]{0}', space=sflag, size = 0x4, scoped, tag = 'scoped memory for tpu_custom_call.1']
    %17 = vsyncpa [#allocation3], 0
    %18 = vsyncpa [#allocation5], 0
    // Predicated region
    $region2: #{tpu_custom_call.1} parent=1 // pred_check
      _
    $region3: #{tpu_custom_call.1} parent=1 // pred_check_branch
      %20 = sbr.rel (0) target = $region5
    $region4: #{tpu_custom_call.1} parent=1 // pred_region
      _
    $region5: #{tpu_custom_call.1} parent=1 // pred_fallthru
      _
    // Predicated region
    $region6: #{tpu_custom_call.1} parent=1 // pred_check
      _
    $region7: #{tpu_custom_call.1} parent=1 // pred_check_branch
      %22 = sbr.rel (0) target = $region9
    $region8: #{tpu_custom_call.1} parent=1 // pred_region
      _
    $region9: #{tpu_custom_call.1} parent=1 // pred_fallthru
      _
    // Predicated region
    $region10: #{tpu_custom_call.1} parent=1 // pred_check
      _
    $region11: #{tpu_custom_call.1} parent=1 // pred_check_branch
      %24 = sbr.rel (0) target = $region13
    $region12: #{tpu_custom_call.1} parent=1 // pred_region
      _
    $region13: #{tpu_custom_call.1} parent=1 // pred_fallthru
      _
    // Predicated region
    $region14: #{tpu_custom_call.1} parent=1 // pred_check
      _
    $region15: #{tpu_custom_call.1} parent=1 // pred_check_branch
      %26 = sbr.rel (0) target = $region17
    $region16: #{tpu_custom_call.1} parent=1 // pred_region
      _
    $region17: #{tpu_custom_call.1} parent=1 // pred_fallthru
      _
    // Predicated region
    $region18: #{tpu_custom_call.1} parent=1 // pred_check
      _
    $region19: #{tpu_custom_call.1} parent=1 // pred_check_branch
      %28 = sbr.rel (0) target = $region21
    $region20: #{tpu_custom_call.1} parent=1 // pred_region
      _
    $region21: #{tpu_custom_call.1} parent=1 // pred_fallthru
      _
    // Predicated region
    $region22: #{tpu_custom_call.1} parent=1 // pred_check
      _
    $region23: #{tpu_custom_call.1} parent=1 // pred_check_branch
      %30 = sbr.rel (0) target = $region25
    $region24: #{tpu_custom_call.1} parent=1 // pred_region
      _
    $region25: #{tpu_custom_call.1} parent=1 // pred_fallthru
      _
    // Predicated region
    $region26: #{tpu_custom_call.1} parent=1 // pred_check
      _
    $region27: #{tpu_custom_call.1} parent=1 // pred_check_branch
      %32 = sbr.rel (0) target = $region29
    $region28: #{tpu_custom_call.1} parent=1 // pred_region
      _
    $region29: #{tpu_custom_call.1} parent=1 // pred_fallthru
      _
    // Predicated region
    $region30: #{tpu_custom_call.1} parent=1 // pred_check
      _
    $region31: #{tpu_custom_call.1} parent=1 // pred_check_branch
      %34 = sbr.rel (0) target = $region33
    $region32: #{tpu_custom_call.1} parent=1 // pred_region
      _
    $region33: #{tpu_custom_call.1} parent=1 // pred_fallthru
      _
    // Predicated region
    $region34: #{tpu_custom_call.1} parent=1 // pred_check
      _
    $region35: #{tpu_custom_call.1} parent=1 // pred_check_branch
      %36 = sbr.rel (0) target = $region37
    $region36: #{tpu_custom_call.1} parent=1 // pred_region
      _
    $region37: #{tpu_custom_call.1} parent=1 // pred_fallthru
      _
    // Predicated region
    $region38: #{tpu_custom_call.1} parent=1 // pred_check
      _
    $region39: #{tpu_custom_call.1} parent=1 // pred_check_branch
      %38 = sbr.rel (0) target = $region41
    $region40: #{tpu_custom_call.1} parent=1 // pred_region
      _
    $region41: #{tpu_custom_call.1} parent=1 // pred_fallthru
      _
    %v39 = vld [vmem:[%s0] sm:$0xff]
    %v40 = vld [vmem:[%s0 + $0x8] sm:$0xff]
    %v41 = vld [vmem:[%s1] sm:$0xff]
    %v42 = vld [vmem:[%s1 + $0x8] sm:$0xff]
    %v43 = vld [vmem:[%s1 + $0x10] sm:$0xff]
    %v44 = vld [vmem:[%s1 + $0x18] sm:$0xff]
    %v45 = vld [vmem:[%s2] sm:$0xff]
    %v46 = vld [vmem:[%s2 + $0x8] sm:$0xff]
    %v47 = vld [vmem:[%s2 + $0x10] sm:$0xff]
    %v48 = vld [vmem:[%s2 + $0x18] sm:$0xff]
    %v49 = vld [vmem:[%s3] sm:$0x1]
    %v51 = vlaneseq
    %v52 = vshrl.u32 %v51, 7
    %v53 = vsub.s32 0, %v52
    %v54 = vrot.slane %v49, %v53
    %vm56 = vcmask 261120
    %v58 = vsel %vm56, %v39, 0
    %v61 = vsel %vm56, %v40, 0
    %63 = vmatprep.subr.mxu0 0.0
    %64 = vmatpush1.msra.mxu0 %v45
    %65 = vmatprep.subr.mxu0 0.0
    %66 = vmatpush1.msra.mxu0 %v46
    %67 = vmatprep.subr.mxu0 0.0
    %68 = vmatpush1.msra.mxu0 %v47
    %69 = vmatprep.subr.mxu0 0.0
    %70 = vmatpush1.msra.mxu0 %v48
    %71 = vmatprep.subr.mxu0 0.0
    %72 = vmatpush1.msra.mxu0 0.0
    %73 = vmatprep.subr.mxu0 0.0
    %74 = vmatpush1.msra.mxu0 0.0
    %75 = vmatprep.subr.mxu0 0.0
    %76 = vmatpush1.msra.mxu0 0.0
    %77 = vmatprep.subr.mxu0 0.0
    %78 = vmatpush1.msra.mxu0 0.0
    %79 = vmatprep.subr.mxu0 0.0
    %80 = vmatpush1.msra.mxu0 0.0
    %81 = vmatprep.subr.mxu0 0.0
    %82 = vmatpush1.msra.mxu0 0.0
    %83 = vmatprep.subr.mxu0 0.0
    %84 = vmatpush1.msra.mxu0 0.0
    %85 = vmatprep.subr.mxu0 0.0
    %86 = vmatpush1.msra.mxu0 0.0
    %87 = vmatprep.subr.mxu0 0.0
    %88 = vmatpush1.msra.mxu0 0.0
    %89 = vmatprep.subr.mxu0 0.0
    %90 = vmatpush1.msra.mxu0 0.0
    %91 = vmatprep.subr.mxu0 0.0
    %92 = vmatpush1.msra.mxu0 0.0
    %93 = vmatprep.subr.mxu0 0.0
    %94 = vmatpush1.msra.mxu0 0.0
    %95 = vmatprep.subr.mxu0 0.0
    %96 = vmatpush1.msra.mxu0 0.0
    %97 = vmatprep.subr.mxu0 0.0
    %98 = vmatpush1.msra.mxu0 0.0
    %99 = vmatprep.subr.mxu0 0.0
    %100 = vmatpush1.msra.mxu0 0.0
    %101 = vmatprep.subr.mxu0 0.0
    %102 = vmatpush1.msra.mxu0 0.0
    %103 = vmatprep.subr.mxu0 0.0
    %104 = vmatpush1.msra.mxu0 0.0
    %105 = vmatprep.subr.mxu0 0.0
    %106 = vmatpush1.msra.mxu0 0.0
    %107 = vmatprep.subr.mxu0 0.0
    %108 = vmatpush1.msra.mxu0 0.0
    %109 = vmatprep.subr.mxu0 0.0
    %110 = vmatpush1.msra.mxu0 0.0
    %111 = vmatprep.subr.mxu0 0.0
    %112 = vmatpush1.msra.mxu0 0.0
    %113 = vmatprep.subr.mxu0 0.0
    %114 = vmatpush1.msra.mxu0 0.0
    %115 = vmatprep.subr.mxu0 0.0
    %116 = vmatpush1.msra.mxu0 0.0
    %117 = vmatprep.subr.mxu0 0.0
    %118 = vmatpush1.msra.mxu0 0.0
    %119 = vmatprep.subr.mxu0 0.0
    %120 = vmatpush1.msra.mxu0 0.0
    %121 = vmatprep.subr.mxu0 0.0
    %122 = vmatpush1.msra.mxu0 0.0
    %123 = vmatprep.subr.mxu0 0.0
    %124 = vmatpush1.msra.mxu0 0.0
    %125 = vmatprep.subr.mxu0 0.0
    %126 = vmatpush1.msra.mxu0 0.0
    %127 = vmatprep.mubr.f32.mxu0 0.0
    %128 = vmatmul.mubr.f32.gmra.mrb[0].mxu0 %v58
    %v129 = vpop.f32.mrb[0].mxu0
    %v130 = vadd.f32 %v54, %v129
    %v131 = vpop.f32.mrb[0].mxu0
    %132 = vmatprep.mubr.f32.mxu0 0.0
    %133 = vmatmul.mubr.f32.gmra.mrb[0].mxu0 %v61
    %v134 = vpop.f32.mrb[0].mxu0
    %v135 = vadd.f32 %v54, %v134
    %v136 = vpop.f32.mrb[0].mxu0
    %137 = vdwg.mxu0
    %v138 = vmul.f32 %v130, 0.35355338
    %v139 = vmul.f32 %v135, 0.35355338
    %v140 = vld [vmem:[%s4] sm:$0xff]
    %v141 = vld [vmem:[%s4 + $0x8] sm:$0xff]
    %v142 = vld [vmem:[%s4 + $0x10] sm:$0xff]
    %v143 = vld [vmem:[%s4 + $0x18] sm:$0xff]
    %v144 = vld [vmem:[%s4 + $0x20] sm:$0xff]
    %v145 = vld [vmem:[%s4 + $0x28] sm:$0xff]
    %v146 = vld [vmem:[%s5] sm:$0x1]
    %v148 = vlaneseq
    %v149 = vshrl.u32 %v148, 7
    %v150 = vsub.s32 0, %v149
    %v151 = vrot.slane %v146, %v150
    %vm153 = vcmask 392192
    %v155 = vsel %vm153, %v41, 0
    %v158 = vsel %vm153, %v42, 0
    %v161 = vsel %vm153, %v43, 0
    %v164 = vsel %vm153, %v44, 0
    %166 = vmatprep.subr.mxu0 0.0
    %167 = vmatpush1.msra.mxu0 %v140
    %168 = vmatprep.subr.mxu0 0.0
    %169 = vmatpush1.msra.mxu0 %v141
    %170 = vmatprep.subr.mxu0 0.0
    %171 = vmatpush1.msra.mxu0 %v142
    %172 = vmatprep.subr.mxu0 0.0
    %173 = vmatpush1.msra.mxu0 %v143
    %174 = vmatprep.subr.mxu0 0.0
    %175 = vmatpush1.msra.mxu0 %v144
    %176 = vmatprep.subr.mxu0 0.0
    %177 = vmatpush1.msra.mxu0 %v145
    %178 = vmatprep.subr.mxu0 0.0
    %179 = vmatpush1.msra.mxu0 0.0
    %180 = vmatprep.subr.mxu0 0.0
    %181 = vmatpush1.msra.mxu0 0.0
    %182 = vmatprep.subr.mxu0 0.0
    %183 = vmatpush1.msra.mxu0 0.0
    %184 = vmatprep.subr.mxu0 0.0
    %185 = vmatpush1.msra.mxu0 0.0
    %186 = vmatprep.subr.mxu0 0.0
    %187 = vmatpush1.msra.mxu0 0.0
    %188 = vmatprep.subr.mxu0 0.0
    %189 = vmatpush1.msra.mxu0 0.0
    %190 = vmatprep.subr.mxu0 0.0
    %191 = vmatpush1.msra.mxu0 0.0
    %192 = vmatprep.subr.mxu0 0.0
    %193 = vmatpush1.msra.mxu0 0.0
    %194 = vmatprep.subr.mxu0 0.0
    %195 = vmatpush1.msra.mxu0 0.0
    %196 = vmatprep.subr.mxu0 0.0
    %197 = vmatpush1.msra.mxu0 0.0
    %198 = vmatprep.subr.mxu0 0.0
    %199 = vmatpush1.msra.mxu0 0.0
    %200 = vmatprep.subr.mxu0 0.0
    %201 = vmatpush1.msra.mxu0 0.0
    %202 = vmatprep.subr.mxu0 0.0
    %203 = vmatpush1.msra.mxu0 0.0
    %204 = vmatprep.subr.mxu0 0.0
    %205 = vmatpush1.msra.mxu0 0.0
    %206 = vmatprep.subr.mxu0 0.0
    %207 = vmatpush1.msra.mxu0 0.0
    %208 = vmatprep.subr.mxu0 0.0
    %209 = vmatpush1.msra.mxu0 0.0
    %210 = vmatprep.subr.mxu0 0.0
    %211 = vmatpush1.msra.mxu0 0.0
    %212 = vmatprep.subr.mxu0 0.0
    %213 = vmatpush1.msra.mxu0 0.0
    %214 = vmatprep.subr.mxu0 0.0
    %215 = vmatpush1.msra.mxu0 0.0
    %216 = vmatprep.subr.mxu0 0.0
    %217 = vmatpush1.msra.mxu0 0.0
    %218 = vmatprep.subr.mxu0 0.0
    %219 = vmatpush1.msra.mxu0 0.0
    %220 = vmatprep.subr.mxu0 0.0
    %221 = vmatpush1.msra.mxu0 0.0
    %222 = vmatprep.subr.mxu0 0.0
    %223 = vmatpush1.msra.mxu0 0.0
    %224 = vmatprep.subr.mxu0 0.0
    %225 = vmatpush1.msra.mxu0 0.0
    %226 = vmatprep.subr.mxu0 0.0
    %227 = vmatpush1.msra.mxu0 0.0
    %228 = vmatprep.subr.mxu0 0.0
    %229 = vmatpush1.msra.mxu0 0.0
    %230 = vmatprep.mubr.f32.mxu0 0.0
    %231 = vmatmul.mubr.f32.gmra.mrb[0].mxu0 %v155
    %v232 = vpop.f32.mrb[0].mxu0
    %v233 = vadd.f32 %v151, %v232
    %v234 = vpop.f32.mrb[0].mxu0
    %235 = vmatprep.mubr.f32.mxu0 0.0
    %236 = vmatmul.mubr.f32.gmra.mrb[0].mxu0 %v158
    %v237 = vpop.f32.mrb[0].mxu0
    %v238 = vadd.f32 %v151, %v237
    %v239 = vpop.f32.mrb[0].mxu0
    %240 = vmatprep.mubr.f32.mxu0 0.0
    %241 = vmatmul.mubr.f32.gmra.mrb[0].mxu0 %v161
    %v242 = vpop.f32.mrb[0].mxu0
    %v243 = vadd.f32 %v151, %v242
    %v244 = vpop.f32.mrb[0].mxu0
    %245 = vmatprep.mubr.f32.mxu0 0.0
    %246 = vmatmul.mubr.f32.gmra.mrb[0].mxu0 %v164
    %v247 = vpop.f32.mrb[0].mxu0
    %v248 = vadd.f32 %v151, %v247
    %v249 = vpop.f32.mrb[0].mxu0
    %250 = vdwg.mxu0
    %v251 = vld [vmem:[%s6] sm:$0xff]
    %v252 = vld [vmem:[%s6 + $0x8] sm:$0xff]
    %v253 = vld [vmem:[%s6 + $0x10] sm:$0xff]
    %v254 = vld [vmem:[%s6 + $0x18] sm:$0xff]
    %v255 = vld [vmem:[%s6 + $0x20] sm:$0xff]
    %v256 = vld [vmem:[%s6 + $0x28] sm:$0xff]
    %v257 = vld [vmem:[%s7] sm:$0x1]
    %v259 = vlaneseq
    %v260 = vshrl.u32 %v259, 7
    %v261 = vsub.s32 0, %v260
    %v262 = vrot.slane %v257, %v261
    %264 = vmatprep.subr.mxu0 0.0
    %265 = vmatpush1.msra.mxu0 %v251
    %266 = vmatprep.subr.mxu0 0.0
    %267 = vmatpush1.msra.mxu0 %v252
    %268 = vmatprep.subr.mxu0 0.0
    %269 = vmatpush1.msra.mxu0 %v253
    %270 = vmatprep.subr.mxu0 0.0
    %271 = vmatpush1.msra.mxu0 %v254
    %272 = vmatprep.subr.mxu0 0.0
    %273 = vmatpush1.msra.mxu0 %v255
    %274 = vmatprep.subr.mxu0 0.0
    %275 = vmatpush1.msra.mxu0 %v256
    %276 = vmatprep.subr.mxu0 0.0
    %277 = vmatpush1.msra.mxu0 0.0
    %278 = vmatprep.subr.mxu0 0.0
    %279 = vmatpush1.msra.mxu0 0.0
    %280 = vmatprep.subr.mxu0 0.0
    %281 = vmatpush1.msra.mxu0 0.0
    %282 = vmatprep.subr.mxu0 0.0
    %283 = vmatpush1.msra.mxu0 0.0
    %284 = vmatprep.subr.mxu0 0.0
    %285 = vmatpush1.msra.mxu0 0.0
    %286 = vmatprep.subr.mxu0 0.0
    %287 = vmatpush1.msra.mxu0 0.0
    %288 = vmatprep.subr.mxu0 0.0
    %289 = vmatpush1.msra.mxu0 0.0
    %290 = vmatprep.subr.mxu0 0.0
    %291 = vmatpush1.msra.mxu0 0.0
    %292 = vmatprep.subr.mxu0 0.0
    %293 = vmatpush1.msra.mxu0 0.0
    %294 = vmatprep.subr.mxu0 0.0
    %295 = vmatpush1.msra.mxu0 0.0
    %296 = vmatprep.subr.mxu0 0.0
    %297 = vmatpush1.msra.mxu0 0.0
    %298 = vmatprep.subr.mxu0 0.0
    %299 = vmatpush1.msra.mxu0 0.0
    %300 = vmatprep.subr.mxu0 0.0
    %301 = vmatpush1.msra.mxu0 0.0
    %302 = vmatprep.subr.mxu0 0.0
    %303 = vmatpush1.msra.mxu0 0.0
    %304 = vmatprep.subr.mxu0 0.0
    %305 = vmatpush1.msra.mxu0 0.0
    %306 = vmatprep.subr.mxu0 0.0
    %307 = vmatpush1.msra.mxu0 0.0
    %308 = vmatprep.subr.mxu0 0.0
    %309 = vmatpush1.msra.mxu0 0.0
    %310 = vmatprep.subr.mxu0 0.0
    %311 = vmatpush1.msra.mxu0 0.0
    %312 = vmatprep.subr.mxu0 0.0
    %313 = vmatpush1.msra.mxu0 0.0
    %314 = vmatprep.subr.mxu0 0.0
    %315 = vmatpush1.msra.mxu0 0.0
    %316 = vmatprep.subr.mxu0 0.0
    %317 = vmatpush1.msra.mxu0 0.0
    %318 = vmatprep.subr.mxu0 0.0
    %319 = vmatpush1.msra.mxu0 0.0
    %320 = vmatprep.subr.mxu0 0.0
    %321 = vmatpush1.msra.mxu0 0.0
    %322 = vmatprep.subr.mxu0 0.0
    %323 = vmatpush1.msra.mxu0 0.0
    %324 = vmatprep.subr.mxu0 0.0
    %325 = vmatpush1.msra.mxu0 0.0
    %326 = vmatprep.subr.mxu0 0.0
    %327 = vmatpush1.msra.mxu0 0.0
    %328 = vmatprep.mubr.f32.mxu0 0.0
    %329 = vmatmul.mubr.f32.gmra.mrb[0].mxu0 %v155
    %v330 = vpop.f32.mrb[0].mxu0
    %v331 = vadd.f32 %v262, %v330
    %v332 = vpop.f32.mrb[0].mxu0
    %333 = vmatprep.mubr.f32.mxu0 0.0
    %334 = vmatmul.mubr.f32.gmra.mrb[0].mxu0 %v158
    %v335 = vpop.f32.mrb[0].mxu0
    %v336 = vadd.f32 %v262, %v335
    %v337 = vpop.f32.mrb[0].mxu0
    %338 = vmatprep.mubr.f32.mxu0 0.0
    %339 = vmatmul.mubr.f32.gmra.mrb[0].mxu0 %v161
    %v340 = vpop.f32.mrb[0].mxu0
    %v341 = vadd.f32 %v262, %v340
    %v342 = vpop.f32.mrb[0].mxu0
    %343 = vmatprep.mubr.f32.mxu0 0.0
    %344 = vmatmul.mubr.f32.gmra.mrb[0].mxu0 %v164
    %v345 = vpop.f32.mrb[0].mxu0
    %v346 = vadd.f32 %v262, %v345
    %v347 = vpop.f32.mrb[0].mxu0
    %348 = vdwg.mxu0
    %vm349 = vcmask 64512
    %v351 = vsel %vm349, %v138, 0
    %v354 = vsel %vm349, %v233, 0
    %v357 = vsel %vm349, %v238, 0
    %359 = vmatprep.subr.mxu0 0.0
    %360 = vmatpush1.xpose.msra.mxu0 %v354
    %361 = vmatprep.subr.mxu0 0.0
    %362 = vmatpush1.xpose.msra.mxu0 %v357
    %363 = vmatprep.subr.mxu0 0.0
    %364 = vmatpush1.xpose.msra.mxu0 0.0
    %365 = vmatprep.subr.mxu0 0.0
    %366 = vmatpush1.xpose.msra.mxu0 0.0
    %367 = vmatprep.subr.mxu0 0.0
    %368 = vmatpush1.xpose.msra.mxu0 0.0
    %369 = vmatprep.subr.mxu0 0.0
    %370 = vmatpush1.xpose.msra.mxu0 0.0
    %371 = vmatprep.subr.mxu0 0.0
    %372 = vmatpush1.xpose.msra.mxu0 0.0
    %373 = vmatprep.subr.mxu0 0.0
    %374 = vmatpush1.xpose.msra.mxu0 0.0
    %375 = vmatprep.subr.mxu0 0.0
    %376 = vmatpush1.xpose.msra.mxu0 0.0
    %377 = vmatprep.subr.mxu0 0.0
    %378 = vmatpush1.xpose.msra.mxu0 0.0
    %379 = vmatprep.subr.mxu0 0.0
    %380 = vmatpush1.xpose.msra.mxu0 0.0
    %381 = vmatprep.subr.mxu0 0.0
    %382 = vmatpush1.xpose.msra.mxu0 0.0
    %383 = vmatprep.subr.mxu0 0.0
    %384 = vmatpush1.xpose.msra.mxu0 0.0
    %385 = vmatprep.subr.mxu0 0.0
    %386 = vmatpush1.xpose.msra.mxu0 0.0
    %387 = vmatprep.subr.mxu0 0.0
    %388 = vmatpush1.xpose.msra.mxu0 0.0
    %389 = vmatprep.subr.mxu0 0.0
    %390 = vmatpush1.xpose.msra.mxu0 0.0
    %391 = vmatprep.subr.mxu0 0.0
    %392 = vmatpush1.xpose.msra.mxu0 0.0
    %393 = vmatprep.subr.mxu0 0.0
    %394 = vmatpush1.xpose.msra.mxu0 0.0
    %395 = vmatprep.subr.mxu0 0.0
    %396 = vmatpush1.xpose.msra.mxu0 0.0
    %397 = vmatprep.subr.mxu0 0.0
    %398 = vmatpush1.xpose.msra.mxu0 0.0
    %399 = vmatprep.subr.mxu0 0.0
    %400 = vmatpush1.xpose.msra.mxu0 0.0
    %401 = vmatprep.subr.mxu0 0.0
    %402 = vmatpush1.xpose.msra.mxu0 0.0
    %403 = vmatprep.subr.mxu0 0.0
    %404 = vmatpush1.xpose.msra.mxu0 0.0
    %405 = vmatprep.subr.mxu0 0.0
    %406 = vmatpush1.xpose.msra.mxu0 0.0
    %407 = vmatprep.subr.mxu0 0.0
    %408 = vmatpush1.xpose.msra.mxu0 0.0
    %409 = vmatprep.subr.mxu0 0.0
    %410 = vmatpush1.xpose.msra.mxu0 0.0
    %411 = vmatprep.subr.mxu0 0.0
    %412 = vmatpush1.xpose.msra.mxu0 0.0
    %413 = vmatprep.subr.mxu0 0.0
    %414 = vmatpush1.xpose.msra.mxu0 0.0
    %415 = vmatprep.subr.mxu0 0.0
    %416 = vmatpush1.xpose.msra.mxu0 0.0
    %417 = vmatprep.subr.mxu0 0.0
    %418 = vmatpush1.xpose.msra.mxu0 0.0
    %419 = vmatprep.subr.mxu0 0.0
    %420 = vmatpush1.xpose.msra.mxu0 0.0
    %421 = vmatprep.subr.mxu0 0.0
    %422 = vmatpush1.xpose.msra.mxu0 0.0
    %423 = vmatprep.mubr.f32.mxu0 0.0
    %424 = vmatmul.mubr.f32.gmra.mrb[0].mxu0 %v351
    %v425 = vpop.f32.mrb[0].mxu0
    %v426 = vadd.f32 0.0, %v425
    %v427 = vpop.f32.mrb[0].mxu0
    %428 = vdwg.mxu0
    %vm429 = vcmask 130048
    %v430 = vsel %vm429, %v426, -inf
    %431 = vmax.xlane.f32.xlu0 %v430
    %v432 = vpop.xlane.xlu0 %431
    %v433 = vsub.f32 %v426, %v432
    %v434 = vmul.f32 %v433, 1.442695
    %v435 = vpow.pop %v434
    %v436 = vsel %vm429, %v435, 0.0
    %437 = vadd.xlane.f32.xlu0 %v436
    %v438 = vpop.xlane.xlu0 %437
    %v439 = vrcp.pop %v438
    %v440 = vmul.f32 %v435, %v439
    %v441 = vadd.f32 %v440, 0.0
    %v443 = vsel %vm429, %v440, 0
    %445 = vmatprep.subr.mxu0 0.0
    %446 = vmatpush1.msra.mxu0 %v331
    %447 = vmatprep.subr.mxu0 0.0
    %448 = vmatpush1.msra.mxu0 %v336
    %449 = vmatprep.subr.mxu0 0.0
    %450 = vmatpush1.msra.mxu0 0.0
    %451 = vmatprep.subr.mxu0 0.0
    %452 = vmatpush1.msra.mxu0 0.0
    %453 = vmatprep.subr.mxu0 0.0
    %454 = vmatpush1.msra.mxu0 0.0
    %455 = vmatprep.subr.mxu0 0.0
    %456 = vmatpush1.msra.mxu0 0.0
    %457 = vmatprep.subr.mxu0 0.0
    %458 = vmatpush1.msra.mxu0 0.0
    %459 = vmatprep.subr.mxu0 0.0
    %460 = vmatpush1.msra.mxu0 0.0
    %461 = vmatprep.subr.mxu0 0.0
    %462 = vmatpush1.msra.mxu0 0.0
    %463 = vmatprep.subr.mxu0 0.0
    %464 = vmatpush1.msra.mxu0 0.0
    %465 = vmatprep.subr.mxu0 0.0
    %466 = vmatpush1.msra.mxu0 0.0
    %467 = vmatprep.subr.mxu0 0.0
    %468 = vmatpush1.msra.mxu0 0.0
    %469 = vmatprep.subr.mxu0 0.0
    %470 = vmatpush1.msra.mxu0 0.0
    %471 = vmatprep.subr.mxu0 0.0
    %472 = vmatpush1.msra.mxu0 0.0
    %473 = vmatprep.subr.mxu0 0.0
    %474 = vmatpush1.msra.mxu0 0.0
    %475 = vmatprep.subr.mxu0 0.0
    %476 = vmatpush1.msra.mxu0 0.0
    %477 = vmatprep.subr.mxu0 0.0
    %478 = vmatpush1.msra.mxu0 0.0
    %479 = vmatprep.subr.mxu0 0.0
    %480 = vmatpush1.msra.mxu0 0.0
    %481 = vmatprep.subr.mxu0 0.0
    %482 = vmatpush1.msra.mxu0 0.0
    %483 = vmatprep.subr.mxu0 0.0
    %484 = vmatpush1.msra.mxu0 0.0
    %485 = vmatprep.subr.mxu0 0.0
    %486 = vmatpush1.msra.mxu0 0.0
    %487 = vmatprep.subr.mxu0 0.0
    %488 = vmatpush1.msra.mxu0 0.0
    %489 = vmatprep.subr.mxu0 0.0
    %490 = vmatpush1.msra.mxu0 0.0
    %491 = vmatprep.subr.mxu0 0.0
    %492 = vmatpush1.msra.mxu0 0.0
    %493 = vmatprep.subr.mxu0 0.0
    %494 = vmatpush1.msra.mxu0 0.0
    %495 = vmatprep.subr.mxu0 0.0
    %496 = vmatpush1.msra.mxu0 0.0
    %497 = vmatprep.subr.mxu0 0.0
    %498 = vmatpush1.msra.mxu0 0.0
    %499 = vmatprep.subr.mxu0 0.0
    %500 = vmatpush1.msra.mxu0 0.0
    %501 = vmatprep.subr.mxu0 0.0
    %502 = vmatpush1.msra.mxu0 0.0
    %503 = vmatprep.subr.mxu0 0.0
    %504 = vmatpush1.msra.mxu0 0.0
    %505 = vmatprep.subr.mxu0 0.0
    %506 = vmatpush1.msra.mxu0 0.0
    %507 = vmatprep.subr.mxu0 0.0
    %508 = vmatpush1.msra.mxu0 0.0
    %509 = vmatprep.mubr.f32.mxu0 0.0
    %510 = vmatmul.mubr.f32.gmra.mrb[0].mxu0 %v443
    %v511 = vpop.f32.mrb[0].mxu0
    %v512 = vadd.f32 0.0, %v511
    %v513 = vpop.f32.mrb[0].mxu0
    %514 = vdwg.mxu0
    %515 = vrot.lane.b32.xlu0 %v138, 120
    %v516 = vpop.permute.xlu0 %515
    %517 = vrot.lane.b32.xlu0 %v233, 120
    %v518 = vpop.permute.xlu0 %517
    %519 = vrot.lane.b32.xlu0 %v238, 120
    %v520 = vpop.permute.xlu0 %519
    %v521 = vsel %vm349, %v516, 0
    %v523 = vsel %vm349, %v518, 0
    %v525 = vsel %vm349, %v520, 0
    %527 = vmatprep.subr.mxu0 0.0
    %528 = vmatpush1.xpose.msra.mxu0 %v523
    %529 = vmatprep.subr.mxu0 0.0
    %530 = vmatpush1.xpose.msra.mxu0 %v525
    %531 = vmatprep.subr.mxu0 0.0
    %532 = vmatpush1.xpose.msra.mxu0 0.0
    %533 = vmatprep.subr.mxu0 0.0
    %534 = vmatpush1.xpose.msra.mxu0 0.0
    %535 = vmatprep.subr.mxu0 0.0
    %536 = vmatpush1.xpose.msra.mxu0 0.0
    %537 = vmatprep.subr.mxu0 0.0
    %538 = vmatpush1.xpose.msra.mxu0 0.0
    %539 = vmatprep.subr.mxu0 0.0
    %540 = vmatpush1.xpose.msra.mxu0 0.0
    %541 = vmatprep.subr.mxu0 0.0
    %542 = vmatpush1.xpose.msra.mxu0 0.0
    %543 = vmatprep.subr.mxu0 0.0
    %544 = vmatpush1.xpose.msra.mxu0 0.0
    %545 = vmatprep.subr.mxu0 0.0
    %546 = vmatpush1.xpose.msra.mxu0 0.0
    %547 = vmatprep.subr.mxu0 0.0
    %548 = vmatpush1.xpose.msra.mxu0 0.0
    %549 = vmatprep.subr.mxu0 0.0
    %550 = vmatpush1.xpose.msra.mxu0 0.0
    %551 = vmatprep.subr.mxu0 0.0
    %552 = vmatpush1.xpose.msra.mxu0 0.0
    %553 = vmatprep.subr.mxu0 0.0
    %554 = vmatpush1.xpose.msra.mxu0 0.0
    %555 = vmatprep.subr.mxu0 0.0
    %556 = vmatpush1.xpose.msra.mxu0 0.0
    %557 = vmatprep.subr.mxu0 0.0
    %558 = vmatpush1.xpose.msra.mxu0 0.0
    %559 = vmatprep.subr.mxu0 0.0
    %560 = vmatpush1.xpose.msra.mxu0 0.0
    %561 = vmatprep.subr.mxu0 0.0
    %562 = vmatpush1.xpose.msra.mxu0 0.0
    %563 = vmatprep.subr.mxu0 0.0
    %564 = vmatpush1.xpose.msra.mxu0 0.0
    %565 = vmatprep.subr.mxu0 0.0
    %566 = vmatpush1.xpose.msra.mxu0 0.0
    %567 = vmatprep.subr.mxu0 0.0
    %568 = vmatpush1.xpose.msra.mxu0 0.0
    %569 = vmatprep.subr.mxu0 0.0
    %570 = vmatpush1.xpose.msra.mxu0 0.0
    %571 = vmatprep.subr.mxu0 0.0
    %572 = vmatpush1.xpose.msra.mxu0 0.0
    %573 = vmatprep.subr.mxu0 0.0
    %574 = vmatpush1.xpose.msra.mxu0 0.0
    %575 = vmatprep.subr.mxu0 0.0
    %576 = vmatpush1.xpose.msra.mxu0 0.0
    %577 = vmatprep.subr.mxu0 0.0
    %578 = vmatpush1.xpose.msra.mxu0 0.0
    %579 = vmatprep.subr.mxu0 0.0
    %580 = vmatpush1.xpose.msra.mxu0 0.0
    %581 = vmatprep.subr.mxu0 0.0
    %582 = vmatpush1.xpose.msra.mxu0 0.0
    %583 = vmatprep.subr.mxu0 0.0
    %584 = vmatpush1.xpose.msra.mxu0 0.0
    %585 = vmatprep.subr.mxu0 0.0
    %586 = vmatpush1.xpose.msra.mxu0 0.0
    %587 = vmatprep.subr.mxu0 0.0
    %588 = vmatpush1.xpose.msra.mxu0 0.0
    %589 = vmatprep.subr.mxu0 0.0
    %590 = vmatpush1.xpose.msra.mxu0 0.0
    %591 = vmatprep.mubr.f32.mxu0 0.0
    %592 = vmatmul.mubr.f32.gmra.mrb[0].mxu0 %v521
    %v593 = vpop.f32.mrb[0].mxu0
    %v594 = vadd.f32 0.0, %v593
    %v595 = vpop.f32.mrb[0].mxu0
    %596 = vdwg.mxu0
    %v597 = vsel %vm429, %v594, -inf
    %598 = vmax.xlane.f32.xlu0 %v597
    %v599 = vpop.xlane.xlu0 %598
    %v600 = vsub.f32 %v594, %v599
    %v601 = vmul.f32 %v600, 1.442695
    %v602 = vpow.pop %v601
    %v603 = vsel %vm429, %v602, 0.0
    %604 = vadd.xlane.f32.xlu0 %v603
    %v605 = vpop.xlane.xlu0 %604
    %v606 = vrcp.pop %v605
    %v607 = vmul.f32 %v602, %v606
    %v608 = vadd.f32 %v441, %v607
    %611 = vrot.lane.b32.xlu0 %v331, 120
    %v612 = vpop.permute.xlu0 %611
    %613 = vrot.lane.b32.xlu0 %v336, 120
    %v614 = vpop.permute.xlu0 %613
    %v618 = vsel %vm429, %v607, 0
    %620 = vmatprep.subr.mxu0 0.0
    %621 = vmatpush1.msra.mxu0 %v612
    %622 = vmatprep.subr.mxu0 0.0
    %623 = vmatpush1.msra.mxu0 %v614
    %624 = vmatprep.subr.mxu0 0.0
    %625 = vmatpush1.msra.mxu0 0.0
    %626 = vmatprep.subr.mxu0 0.0
    %627 = vmatpush1.msra.mxu0 0.0
    %628 = vmatprep.subr.mxu0 0.0
    %629 = vmatpush1.msra.mxu0 0.0
    %630 = vmatprep.subr.mxu0 0.0
    %631 = vmatpush1.msra.mxu0 0.0
    %632 = vmatprep.subr.mxu0 0.0
    %633 = vmatpush1.msra.mxu0 0.0
    %634 = vmatprep.subr.mxu0 0.0
    %635 = vmatpush1.msra.mxu0 0.0
    %636 = vmatprep.subr.mxu0 0.0
    %637 = vmatpush1.msra.mxu0 0.0
    %638 = vmatprep.subr.mxu0 0.0
    %639 = vmatpush1.msra.mxu0 0.0
    %640 = vmatprep.subr.mxu0 0.0
    %641 = vmatpush1.msra.mxu0 0.0
    %642 = vmatprep.subr.mxu0 0.0
    %643 = vmatpush1.msra.mxu0 0.0
    %644 = vmatprep.subr.mxu0 0.0
    %645 = vmatpush1.msra.mxu0 0.0
    %646 = vmatprep.subr.mxu0 0.0
    %647 = vmatpush1.msra.mxu0 0.0
    %648 = vmatprep.subr.mxu0 0.0
    %649 = vmatpush1.msra.mxu0 0.0
    %650 = vmatprep.subr.mxu0 0.0
    %651 = vmatpush1.msra.mxu0 0.0
    %652 = vmatprep.subr.mxu0 0.0
    %653 = vmatpush1.msra.mxu0 0.0
    %654 = vmatprep.subr.mxu0 0.0
    %655 = vmatpush1.msra.mxu0 0.0
    %656 = vmatprep.subr.mxu0 0.0
    %657 = vmatpush1.msra.mxu0 0.0
    %658 = vmatprep.subr.mxu0 0.0
    %659 = vmatpush1.msra.mxu0 0.0
    %660 = vmatprep.subr.mxu0 0.0
    %661 = vmatpush1.msra.mxu0 0.0
    %662 = vmatprep.subr.mxu0 0.0
    %663 = vmatpush1.msra.mxu0 0.0
    %664 = vmatprep.subr.mxu0 0.0
    %665 = vmatpush1.msra.mxu0 0.0
    %666 = vmatprep.subr.mxu0 0.0
    %667 = vmatpush1.msra.mxu0 0.0
    %668 = vmatprep.subr.mxu0 0.0
    %669 = vmatpush1.msra.mxu0 0.0
    %670 = vmatprep.subr.mxu0 0.0
    %671 = vmatpush1.msra.mxu0 0.0
    %672 = vmatprep.subr.mxu0 0.0
    %673 = vmatpush1.msra.mxu0 0.0
    %674 = vmatprep.subr.mxu0 0.0
    %675 = vmatpush1.msra.mxu0 0.0
    %676 = vmatprep.subr.mxu0 0.0
    %677 = vmatpush1.msra.mxu0 0.0
    %678 = vmatprep.subr.mxu0 0.0
    %679 = vmatpush1.msra.mxu0 0.0
    %680 = vmatprep.subr.mxu0 0.0
    %681 = vmatpush1.msra.mxu0 0.0
    %682 = vmatprep.subr.mxu0 0.0
    %683 = vmatpush1.msra.mxu0 0.0
    %684 = vmatprep.mubr.f32.mxu0 0.0
    %685 = vmatmul.mubr.f32.gmra.mrb[0].mxu0 %v618
    %v686 = vpop.f32.mrb[0].mxu0
    %v687 = vadd.f32 0.0, %v686
    %v688 = vpop.f32.mrb[0].mxu0
    %689 = vdwg.mxu0
    %690 = vrot.lane.b32.xlu0 %v138, 112
    %v691 = vpop.permute.xlu0 %690
    %692 = vrot.lane.b32.xlu0 %v233, 112
    %v693 = vpop.permute.xlu0 %692
    %694 = vrot.lane.b32.xlu0 %v238, 112
    %v695 = vpop.permute.xlu0 %694
    %v696 = vsel %vm349, %v691, 0
    %v698 = vsel %vm349, %v693, 0
    %v700 = vsel %vm349, %v695, 0
    %702 = vmatprep.subr.mxu0 0.0
    %703 = vmatpush1.xpose.msra.mxu0 %v698
    %704 = vmatprep.subr.mxu0 0.0
    %705 = vmatpush1.xpose.msra.mxu0 %v700
    %706 = vmatprep.subr.mxu0 0.0
    %707 = vmatpush1.xpose.msra.mxu0 0.0
    %708 = vmatprep.subr.mxu0 0.0
    %709 = vmatpush1.xpose.msra.mxu0 0.0
    %710 = vmatprep.subr.mxu0 0.0
    %711 = vmatpush1.xpose.msra.mxu0 0.0
    %712 = vmatprep.subr.mxu0 0.0
    %713 = vmatpush1.xpose.msra.mxu0 0.0
    %714 = vmatprep.subr.mxu0 0.0
    %715 = vmatpush1.xpose.msra.mxu0 0.0
    %716 = vmatprep.subr.mxu0 0.0
    %717 = vmatpush1.xpose.msra.mxu0 0.0
    %718 = vmatprep.subr.mxu0 0.0
    %719 = vmatpush1.xpose.msra.mxu0 0.0
    %720 = vmatprep.subr.mxu0 0.0
    %721 = vmatpush1.xpose.msra.mxu0 0.0
    %722 = vmatprep.subr.mxu0 0.0
    %723 = vmatpush1.xpose.msra.mxu0 0.0
    %724 = vmatprep.subr.mxu0 0.0
    %725 = vmatpush1.xpose.msra.mxu0 0.0
    %726 = vmatprep.subr.mxu0 0.0
    %727 = vmatpush1.xpose.msra.mxu0 0.0
    %728 = vmatprep.subr.mxu0 0.0
    %729 = vmatpush1.xpose.msra.mxu0 0.0
    %730 = vmatprep.subr.mxu0 0.0
    %731 = vmatpush1.xpose.msra.mxu0 0.0
    %732 = vmatprep.subr.mxu0 0.0
    %733 = vmatpush1.xpose.msra.mxu0 0.0
    %734 = vmatprep.subr.mxu0 0.0
    %735 = vmatpush1.xpose.msra.mxu0 0.0
    %736 = vmatprep.subr.mxu0 0.0
    %737 = vmatpush1.xpose.msra.mxu0 0.0
    %738 = vmatprep.subr.mxu0 0.0
    %739 = vmatpush1.xpose.msra.mxu0 0.0
    %740 = vmatprep.subr.mxu0 0.0
    %741 = vmatpush1.xpose.msra.mxu0 0.0
    %742 = vmatprep.subr.mxu0 0.0
    %743 = vmatpush1.xpose.msra.mxu0 0.0
    %744 = vmatprep.subr.mxu0 0.0
    %745 = vmatpush1.xpose.msra.mxu0 0.0
    %746 = vmatprep.subr.mxu0 0.0
    %747 = vmatpush1.xpose.msra.mxu0 0.0
    %748 = vmatprep.subr.mxu0 0.0
    %749 = vmatpush1.xpose.msra.mxu0 0.0
    %750 = vmatprep.subr.mxu0 0.0
    %751 = vmatpush1.xpose.msra.mxu0 0.0
    %752 = vmatprep.subr.mxu0 0.0
    %753 = vmatpush1.xpose.msra.mxu0 0.0
    %754 = vmatprep.subr.mxu0 0.0
    %755 = vmatpush1.xpose.msra.mxu0 0.0
    %756 = vmatprep.subr.mxu0 0.0
    %757 = vmatpush1.xpose.msra.mxu0 0.0
    %758 = vmatprep.subr.mxu0 0.0
    %759 = vmatpush1.xpose.msra.mxu0 0.0
    %760 = vmatprep.subr.mxu0 0.0
    %761 = vmatpush1.xpose.msra.mxu0 0.0
    %762 = vmatprep.subr.mxu0 0.0
    %763 = vmatpush1.xpose.msra.mxu0 0.0
    %764 = vmatprep.subr.mxu0 0.0
    %765 = vmatpush1.xpose.msra.mxu0 0.0
    %766 = vmatprep.mubr.f32.mxu0 0.0
    %767 = vmatmul.mubr.f32.gmra.mrb[0].mxu0 %v696
    %v768 = vpop.f32.mrb[0].mxu0
    %v769 = vadd.f32 0.0, %v768
    %v770 = vpop.f32.mrb[0].mxu0
    %771 = vdwg.mxu0
    %v772 = vsel %vm429, %v769, -inf
    %773 = vmax.xlane.f32.xlu0 %v772
    %v774 = vpop.xlane.xlu0 %773
    %v775 = vsub.f32 %v769, %v774
    %v776 = vmul.f32 %v775, 1.442695
    %v777 = vpow.pop %v776
    %v778 = vsel %vm429, %v777, 0.0
    %779 = vadd.xlane.f32.xlu0 %v778
    %v780 = vpop.xlane.xlu0 %779
    %v781 = vrcp.pop %v780
    %v782 = vmul.f32 %v777, %v781
    %v783 = vadd.f32 %v608, %v782
    %784 = vrot.lane.b32.xlu0 %v331, 112
    %v785 = vpop.permute.xlu0 %784
    %786 = vrot.lane.b32.xlu0 %v336, 112
    %v787 = vpop.permute.xlu0 %786
    %v791 = vsel %vm429, %v782, 0
    %793 = vmatprep.subr.mxu0 0.0
    %794 = vmatpush1.msra.mxu0 %v785
    %795 = vmatprep.subr.mxu0 0.0
    %796 = vmatpush1.msra.mxu0 %v787
    %797 = vmatprep.subr.mxu0 0.0
    %798 = vmatpush1.msra.mxu0 0.0
    %799 = vmatprep.subr.mxu0 0.0
    %800 = vmatpush1.msra.mxu0 0.0
    %801 = vmatprep.subr.mxu0 0.0
    %802 = vmatpush1.msra.mxu0 0.0
    %803 = vmatprep.subr.mxu0 0.0
    %804 = vmatpush1.msra.mxu0 0.0
    %805 = vmatprep.subr.mxu0 0.0
    %806 = vmatpush1.msra.mxu0 0.0
    %807 = vmatprep.subr.mxu0 0.0
    %808 = vmatpush1.msra.mxu0 0.0
    %809 = vmatprep.subr.mxu0 0.0
    %810 = vmatpush1.msra.mxu0 0.0
    %811 = vmatprep.subr.mxu0 0.0
    %812 = vmatpush1.msra.mxu0 0.0
    %813 = vmatprep.subr.mxu0 0.0
    %814 = vmatpush1.msra.mxu0 0.0
    %815 = vmatprep.subr.mxu0 0.0
    %816 = vmatpush1.msra.mxu0 0.0
    %817 = vmatprep.subr.mxu0 0.0
    %818 = vmatpush1.msra.mxu0 0.0
    %819 = vmatprep.subr.mxu0 0.0
    %820 = vmatpush1.msra.mxu0 0.0
    %821 = vmatprep.subr.mxu0 0.0
    %822 = vmatpush1.msra.mxu0 0.0
    %823 = vmatprep.subr.mxu0 0.0
    %824 = vmatpush1.msra.mxu0 0.0
    %825 = vmatprep.subr.mxu0 0.0
    %826 = vmatpush1.msra.mxu0 0.0
    %827 = vmatprep.subr.mxu0 0.0
    %828 = vmatpush1.msra.mxu0 0.0
    %829 = vmatprep.subr.mxu0 0.0
    %830 = vmatpush1.msra.mxu0 0.0
    %831 = vmatprep.subr.mxu0 0.0
    %832 = vmatpush1.msra.mxu0 0.0
    %833 = vmatprep.subr.mxu0 0.0
    %834 = vmatpush1.msra.mxu0 0.0
    %835 = vmatprep.subr.mxu0 0.0
    %836 = vmatpush1.msra.mxu0 0.0
    %837 = vmatprep.subr.mxu0 0.0
    %838 = vmatpush1.msra.mxu0 0.0
    %839 = vmatprep.subr.mxu0 0.0
    %840 = vmatpush1.msra.mxu0 0.0
    %841 = vmatprep.subr.mxu0 0.0
    %842 = vmatpush1.msra.mxu0 0.0
    %843 = vmatprep.subr.mxu0 0.0
    %844 = vmatpush1.msra.mxu0 0.0
    %845 = vmatprep.subr.mxu0 0.0
    %846 = vmatpush1.msra.mxu0 0.0
    %847 = vmatprep.subr.mxu0 0.0
    %848 = vmatpush1.msra.mxu0 0.0
    %849 = vmatprep.subr.mxu0 0.0
    %850 = vmatpush1.msra.mxu0 0.0
    %851 = vmatprep.subr.mxu0 0.0
    %852 = vmatpush1.msra.mxu0 0.0
    %853 = vmatprep.subr.mxu0 0.0
    %854 = vmatpush1.msra.mxu0 0.0
    %855 = vmatprep.subr.mxu0 0.0
    %856 = vmatpush1.msra.mxu0 0.0
    %857 = vmatprep.mubr.f32.mxu0 0.0
    %858 = vmatmul.mubr.f32.gmra.mrb[0].mxu0 %v791
    %v859 = vpop.f32.mrb[0].mxu0
    %v860 = vadd.f32 0.0, %v859
    %v861 = vpop.f32.mrb[0].mxu0
    %862 = vdwg.mxu0
    %863 = vrot.lane.b32.xlu0 %v138, 104
    %v864 = vpop.permute.xlu0 %863
    %865 = vrot.lane.b32.xlu0 %v233, 104
    %v866 = vpop.permute.xlu0 %865
    %867 = vrot.lane.b32.xlu0 %v238, 104
    %v868 = vpop.permute.xlu0 %867
    %v869 = vsel %vm349, %v864, 0
    %v871 = vsel %vm349, %v866, 0
    %v873 = vsel %vm349, %v868, 0
    %875 = vmatprep.subr.mxu0 0.0
    %876 = vmatpush1.xpose.msra.mxu0 %v871
    %877 = vmatprep.subr.mxu0 0.0
    %878 = vmatpush1.xpose.msra.mxu0 %v873
    %879 = vmatprep.subr.mxu0 0.0
    %880 = vmatpush1.xpose.msra.mxu0 0.0
    %881 = vmatprep.subr.mxu0 0.0
    %882 = vmatpush1.xpose.msra.mxu0 0.0
    %883 = vmatprep.subr.mxu0 0.0
    %884 = vmatpush1.xpose.msra.mxu0 0.0
    %885 = vmatprep.subr.mxu0 0.0
    %886 = vmatpush1.xpose.msra.mxu0 0.0
    %887 = vmatprep.subr.mxu0 0.0
    %888 = vmatpush1.xpose.msra.mxu0 0.0
    %889 = vmatprep.subr.mxu0 0.0
    %890 = vmatpush1.xpose.msra.mxu0 0.0
    %891 = vmatprep.subr.mxu0 0.0
    %892 = vmatpush1.xpose.msra.mxu0 0.0
    %893 = vmatprep.subr.mxu0 0.0
    %894 = vmatpush1.xpose.msra.mxu0 0.0
    %895 = vmatprep.subr.mxu0 0.0
    %896 = vmatpush1.xpose.msra.mxu0 0.0
    %897 = vmatprep.subr.mxu0 0.0
    %898 = vmatpush1.xpose.msra.mxu0 0.0
    %899 = vmatprep.subr.mxu0 0.0
    %900 = vmatpush1.xpose.msra.mxu0 0.0
    %901 = vmatprep.subr.mxu0 0.0
    %902 = vmatpush1.xpose.msra.mxu0 0.0
    %903 = vmatprep.subr.mxu0 0.0
    %904 = vmatpush1.xpose.msra.mxu0 0.0
    %905 = vmatprep.subr.mxu0 0.0
    %906 = vmatpush1.xpose.msra.mxu0 0.0
    %907 = vmatprep.subr.mxu0 0.0
    %908 = vmatpush1.xpose.msra.mxu0 0.0
    %909 = vmatprep.subr.mxu0 0.0
    %910 = vmatpush1.xpose.msra.mxu0 0.0
    %911 = vmatprep.subr.mxu0 0.0
    %912 = vmatpush1.xpose.msra.mxu0 0.0
    %913 = vmatprep.subr.mxu0 0.0
    %914 = vmatpush1.xpose.msra.mxu0 0.0
    %915 = vmatprep.subr.mxu0 0.0
    %916 = vmatpush1.xpose.msra.mxu0 0.0
    %917 = vmatprep.subr.mxu0 0.0
    %918 = vmatpush1.xpose.msra.mxu0 0.0
    %919 = vmatprep.subr.mxu0 0.0
    %920 = vmatpush1.xpose.msra.mxu0 0.0
    %921 = vmatprep.subr.mxu0 0.0
    %922 = vmatpush1.xpose.msra.mxu0 0.0
    %923 = vmatprep.subr.mxu0 0.0
    %924 = vmatpush1.xpose.msra.mxu0 0.0
    %925 = vmatprep.subr.mxu0 0.0
    %926 = vmatpush1.xpose.msra.mxu0 0.0
    %927 = vmatprep.subr.mxu0 0.0
    %928 = vmatpush1.xpose.msra.mxu0 0.0
    %929 = vmatprep.subr.mxu0 0.0
    %930 = vmatpush1.xpose.msra.mxu0 0.0
    %931 = vmatprep.subr.mxu0 0.0
    %932 = vmatpush1.xpose.msra.mxu0 0.0
    %933 = vmatprep.subr.mxu0 0.0
    %934 = vmatpush1.xpose.msra.mxu0 0.0
    %935 = vmatprep.subr.mxu0 0.0
    %936 = vmatpush1.xpose.msra.mxu0 0.0
    %937 = vmatprep.subr.mxu0 0.0
    %938 = vmatpush1.xpose.msra.mxu0 0.0
    %939 = vmatprep.mubr.f32.mxu0 0.0
    %940 = vmatmul.mubr.f32.gmra.mrb[0].mxu0 %v869
    %v941 = vpop.f32.mrb[0].mxu0
    %v942 = vadd.f32 0.0, %v941
    %v943 = vpop.f32.mrb[0].mxu0
    %944 = vdwg.mxu0
    %v945 = vsel %vm429, %v942, -inf
    %946 = vmax.xlane.f32.xlu0 %v945
    %v947 = vpop.xlane.xlu0 %946
    %v948 = vsub.f32 %v942, %v947
    %v949 = vmul.f32 %v948, 1.442695
    %v950 = vpow.pop %v949
    %v951 = vsel %vm429, %v950, 0.0
    %952 = vadd.xlane.f32.xlu0 %v951
    %v953 = vpop.xlane.xlu0 %952
    %v954 = vrcp.pop %v953
    %v955 = vmul.f32 %v950, %v954
    %v956 = vadd.f32 %v783, %v955
    %957 = vrot.lane.b32.xlu0 %v331, 104
    %v958 = vpop.permute.xlu0 %957
    %959 = vrot.lane.b32.xlu0 %v336, 104
    %v960 = vpop.permute.xlu0 %959
    %v964 = vsel %vm429, %v955, 0
    %966 = vmatprep.subr.mxu0 0.0
    %967 = vmatpush1.msra.mxu0 %v958
    %968 = vmatprep.subr.mxu0 0.0
    %969 = vmatpush1.msra.mxu0 %v960
    %970 = vmatprep.subr.mxu0 0.0
    %971 = vmatpush1.msra.mxu0 0.0
    %972 = vmatprep.subr.mxu0 0.0
    %973 = vmatpush1.msra.mxu0 0.0
    %974 = vmatprep.subr.mxu0 0.0
    %975 = vmatpush1.msra.mxu0 0.0
    %976 = vmatprep.subr.mxu0 0.0
    %977 = vmatpush1.msra.mxu0 0.0
    %978 = vmatprep.subr.mxu0 0.0
    %979 = vmatpush1.msra.mxu0 0.0
    %980 = vmatprep.subr.mxu0 0.0
    %981 = vmatpush1.msra.mxu0 0.0
    %982 = vmatprep.subr.mxu0 0.0
    %983 = vmatpush1.msra.mxu0 0.0
    %984 = vmatprep.subr.mxu0 0.0
    %985 = vmatpush1.msra.mxu0 0.0
    %986 = vmatprep.subr.mxu0 0.0
    %987 = vmatpush1.msra.mxu0 0.0
    %988 = vmatprep.subr.mxu0 0.0
    %989 = vmatpush1.msra.mxu0 0.0
    %990 = vmatprep.subr.mxu0 0.0
    %991 = vmatpush1.msra.mxu0 0.0
    %992 = vmatprep.subr.mxu0 0.0
    %993 = vmatpush1.msra.mxu0 0.0
    %994 = vmatprep.subr.mxu0 0.0
    %995 = vmatpush1.msra.mxu0 0.0
    %996 = vmatprep.subr.mxu0 0.0
    %997 = vmatpush1.msra.mxu0 0.0
    %998 = vmatprep.subr.mxu0 0.0
    %999 = vmatpush1.msra.mxu0 0.0
    %1000 = vmatprep.subr.mxu0 0.0
    %1001 = vmatpush1.msra.mxu0 0.0
    %1002 = vmatprep.subr.mxu0 0.0
    %1003 = vmatpush1.msra.mxu0 0.0
    %1004 = vmatprep.subr.mxu0 0.0
    %1005 = vmatpush1.msra.mxu0 0.0
    %1006 = vmatprep.subr.mxu0 0.0
    %1007 = vmatpush1.msra.mxu0 0.0
    %1008 = vmatprep.subr.mxu0 0.0
    %1009 = vmatpush1.msra.mxu0 0.0
    %1010 = vmatprep.subr.mxu0 0.0
    %1011 = vmatpush1.msra.mxu0 0.0
    %1012 = vmatprep.subr.mxu0 0.0
    %1013 = vmatpush1.msra.mxu0 0.0
    %1014 = vmatprep.subr.mxu0 0.0
    %1015 = vmatpush1.msra.mxu0 0.0
    %1016 = vmatprep.subr.mxu0 0.0
    %1017 = vmatpush1.msra.mxu0 0.0
    %1018 = vmatprep.subr.mxu0 0.0
    %1019 = vmatpush1.msra.mxu0 0.0
    %1020 = vmatprep.subr.mxu0 0.0
    %1021 = vmatpush1.msra.mxu0 0.0
    %1022 = vmatprep.subr.mxu0 0.0
    %1023 = vmatpush1.msra.mxu0 0.0
    %1024 = vmatprep.subr.mxu0 0.0
    %1025 = vmatpush1.msra.mxu0 0.0
    %1026 = vmatprep.subr.mxu0 0.0
    %1027 = vmatpush1.msra.mxu0 0.0
    %1028 = vmatprep.subr.mxu0 0.0
    %1029 = vmatpush1.msra.mxu0 0.0
    %1030 = vmatprep.mubr.f32.mxu0 0.0
    %1031 = vmatmul.mubr.f32.gmra.mrb[0].mxu0 %v964
    %v1032 = vpop.f32.mrb[0].mxu0
    %v1033 = vadd.f32 0.0, %v1032
    %v1034 = vpop.f32.mrb[0].mxu0
    %1035 = vdwg.mxu0
    %1037 = vrot.lane.b32.xlu0 %v687, 8
    %v1038 = vpop.permute.xlu0 %1037
    %1041 = vrot.lane.b32.xlu0 %v860, 16
    %v1042 = vpop.permute.xlu0 %1041
    %1045 = vrot.lane.b32.xlu0 %v1033, 24
    %v1046 = vpop.permute.xlu0 %1045
    %v1048 = vsel %vm349, %v512, %v1038
    %v1049 = vsel %vm429, %v1048, %v1042
    %vm1050 = vcmask 195584
    %v1051 = vsel %vm1050, %v1049, %v1046
    %v1052 = vmul.f32 %v956, 0.25
    %v1054 = vsel %vm349, %v139, 0
    %v1057 = vsel %vm349, %v243, 0
    %v1060 = vsel %vm349, %v248, 0
    %1062 = vmatprep.subr.mxu0 0.0
    %1063 = vmatpush1.xpose.msra.mxu0 %v1057
    %1064 = vmatprep.subr.mxu0 0.0
    %1065 = vmatpush1.xpose.msra.mxu0 %v1060
    %1066 = vmatprep.subr.mxu0 0.0
    %1067 = vmatpush1.xpose.msra.mxu0 0.0
    %1068 = vmatprep.subr.mxu0 0.0
    %1069 = vmatpush1.xpose.msra.mxu0 0.0
    %1070 = vmatprep.subr.mxu0 0.0
    %1071 = vmatpush1.xpose.msra.mxu0 0.0
    %1072 = vmatprep.subr.mxu0 0.0
    %1073 = vmatpush1.xpose.msra.mxu0 0.0
    %1074 = vmatprep.subr.mxu0 0.0
    %1075 = vmatpush1.xpose.msra.mxu0 0.0
    %1076 = vmatprep.subr.mxu0 0.0
    %1077 = vmatpush1.xpose.msra.mxu0 0.0
    %1078 = vmatprep.subr.mxu0 0.0
    %1079 = vmatpush1.xpose.msra.mxu0 0.0
    %1080 = vmatprep.subr.mxu0 0.0
    %1081 = vmatpush1.xpose.msra.mxu0 0.0
    %1082 = vmatprep.subr.mxu0 0.0
    %1083 = vmatpush1.xpose.msra.mxu0 0.0
    %1084 = vmatprep.subr.mxu0 0.0
    %1085 = vmatpush1.xpose.msra.mxu0 0.0
    %1086 = vmatprep.subr.mxu0 0.0
    %1087 = vmatpush1.xpose.msra.mxu0 0.0
    %1088 = vmatprep.subr.mxu0 0.0
    %1089 = vmatpush1.xpose.msra.mxu0 0.0
    %1090 = vmatprep.subr.mxu0 0.0
    %1091 = vmatpush1.xpose.msra.mxu0 0.0
    %1092 = vmatprep.subr.mxu0 0.0
    %1093 = vmatpush1.xpose.msra.mxu0 0.0
    %1094 = vmatprep.subr.mxu0 0.0
    %1095 = vmatpush1.xpose.msra.mxu0 0.0
    %1096 = vmatprep.subr.mxu0 0.0
    %1097 = vmatpush1.xpose.msra.mxu0 0.0
    %1098 = vmatprep.subr.mxu0 0.0
    %1099 = vmatpush1.xpose.msra.mxu0 0.0
    %1100 = vmatprep.subr.mxu0 0.0
    %1101 = vmatpush1.xpose.msra.mxu0 0.0
    %1102 = vmatprep.subr.mxu0 0.0
    %1103 = vmatpush1.xpose.msra.mxu0 0.0
    %1104 = vmatprep.subr.mxu0 0.0
    %1105 = vmatpush1.xpose.msra.mxu0 0.0
    %1106 = vmatprep.subr.mxu0 0.0
    %1107 = vmatpush1.xpose.msra.mxu0 0.0
    %1108 = vmatprep.subr.mxu0 0.0
    %1109 = vmatpush1.xpose.msra.mxu0 0.0
    %1110 = vmatprep.subr.mxu0 0.0
    %1111 = vmatpush1.xpose.msra.mxu0 0.0
    %1112 = vmatprep.subr.mxu0 0.0
    %1113 = vmatpush1.xpose.msra.mxu0 0.0
    %1114 = vmatprep.subr.mxu0 0.0
    %1115 = vmatpush1.xpose.msra.mxu0 0.0
    %1116 = vmatprep.subr.mxu0 0.0
    %1117 = vmatpush1.xpose.msra.mxu0 0.0
    %1118 = vmatprep.subr.mxu0 0.0
    %1119 = vmatpush1.xpose.msra.mxu0 0.0
    %1120 = vmatprep.subr.mxu0 0.0
    %1121 = vmatpush1.xpose.msra.mxu0 0.0
    %1122 = vmatprep.subr.mxu0 0.0
    %1123 = vmatpush1.xpose.msra.mxu0 0.0
    %1124 = vmatprep.subr.mxu0 0.0
    %1125 = vmatpush1.xpose.msra.mxu0 0.0
    %1126 = vmatprep.mubr.f32.mxu0 0.0
    %1127 = vmatmul.mubr.f32.gmra.mrb[0].mxu0 %v1054
    %v1128 = vpop.f32.mrb[0].mxu0
    %v1129 = vadd.f32 0.0, %v1128
    %v1130 = vpop.f32.mrb[0].mxu0
    %1131 = vdwg.mxu0
    %v1132 = vsel %vm429, %v1129, -inf
    %1133 = vmax.xlane.f32.xlu0 %v1132
    %v1134 = vpop.xlane.xlu0 %1133
    %v1135 = vsub.f32 %v1129, %v1134
    %v1136 = vmul.f32 %v1135, 1.442695
    %v1137 = vpow.pop %v1136
    %v1138 = vsel %vm429, %v1137, 0.0
    %1139 = vadd.xlane.f32.xlu0 %v1138
    %v1140 = vpop.xlane.xlu0 %1139
    %v1141 = vrcp.pop %v1140
    %v1142 = vmul.f32 %v1137, %v1141
    %v1143 = vadd.f32 %v1142, 0.0
    %v1145 = vsel %vm429, %v1142, 0
    %1147 = vmatprep.subr.mxu0 0.0
    %1148 = vmatpush1.msra.mxu0 %v341
    %1149 = vmatprep.subr.mxu0 0.0
    %1150 = vmatpush1.msra.mxu0 %v346
    %1151 = vmatprep.subr.mxu0 0.0
    %1152 = vmatpush1.msra.mxu0 0.0
    %1153 = vmatprep.subr.mxu0 0.0
    %1154 = vmatpush1.msra.mxu0 0.0
    %1155 = vmatprep.subr.mxu0 0.0
    %1156 = vmatpush1.msra.mxu0 0.0
    %1157 = vmatprep.subr.mxu0 0.0
    %1158 = vmatpush1.msra.mxu0 0.0
    %1159 = vmatprep.subr.mxu0 0.0
    %1160 = vmatpush1.msra.mxu0 0.0
    %1161 = vmatprep.subr.mxu0 0.0
    %1162 = vmatpush1.msra.mxu0 0.0
    %1163 = vmatprep.subr.mxu0 0.0
    %1164 = vmatpush1.msra.mxu0 0.0
    %1165 = vmatprep.subr.mxu0 0.0
    %1166 = vmatpush1.msra.mxu0 0.0
    %1167 = vmatprep.subr.mxu0 0.0
    %1168 = vmatpush1.msra.mxu0 0.0
    %1169 = vmatprep.subr.mxu0 0.0
    %1170 = vmatpush1.msra.mxu0 0.0
    %1171 = vmatprep.subr.mxu0 0.0
    %1172 = vmatpush1.msra.mxu0 0.0
    %1173 = vmatprep.subr.mxu0 0.0
    %1174 = vmatpush1.msra.mxu0 0.0
    %1175 = vmatprep.subr.mxu0 0.0
    %1176 = vmatpush1.msra.mxu0 0.0
    %1177 = vmatprep.subr.mxu0 0.0
    %1178 = vmatpush1.msra.mxu0 0.0
    %1179 = vmatprep.subr.mxu0 0.0
    %1180 = vmatpush1.msra.mxu0 0.0
    %1181 = vmatprep.subr.mxu0 0.0
    %1182 = vmatpush1.msra.mxu0 0.0
    %1183 = vmatprep.subr.mxu0 0.0
    %1184 = vmatpush1.msra.mxu0 0.0
    %1185 = vmatprep.subr.mxu0 0.0
    %1186 = vmatpush1.msra.mxu0 0.0
    %1187 = vmatprep.subr.mxu0 0.0
    %1188 = vmatpush1.msra.mxu0 0.0
    %1189 = vmatprep.subr.mxu0 0.0
    %1190 = vmatpush1.msra.mxu0 0.0
    %1191 = vmatprep.subr.mxu0 0.0
    %1192 = vmatpush1.msra.mxu0 0.0
    %1193 = vmatprep.subr.mxu0 0.0
    %1194 = vmatpush1.msra.mxu0 0.0
    %1195 = vmatprep.subr.mxu0 0.0
    %1196 = vmatpush1.msra.mxu0 0.0
    %1197 = vmatprep.subr.mxu0 0.0
    %1198 = vmatpush1.msra.mxu0 0.0
    %1199 = vmatprep.subr.mxu0 0.0
    %1200 = vmatpush1.msra.mxu0 0.0
    %1201 = vmatprep.subr.mxu0 0.0
    %1202 = vmatpush1.msra.mxu0 0.0
    %1203 = vmatprep.subr.mxu0 0.0
    %1204 = vmatpush1.msra.mxu0 0.0
    %1205 = vmatprep.subr.mxu0 0.0
    %1206 = vmatpush1.msra.mxu0 0.0
    %1207 = vmatprep.subr.mxu0 0.0
    %1208 = vmatpush1.msra.mxu0 0.0
    %1209 = vmatprep.subr.mxu0 0.0
    %1210 = vmatpush1.msra.mxu0 0.0
    %1211 = vmatprep.mubr.f32.mxu0 0.0
    %1212 = vmatmul.mubr.f32.gmra.mrb[0].mxu0 %v1145
    %v1213 = vpop.f32.mrb[0].mxu0
    %v1214 = vadd.f32 0.0, %v1213
    %v1215 = vpop.f32.mrb[0].mxu0
    %1216 = vdwg.mxu0
    %1217 = vrot.lane.b32.xlu0 %v139, 120
    %v1218 = vpop.permute.xlu0 %1217
    %1219 = vrot.lane.b32.xlu0 %v243, 120
    %v1220 = vpop.permute.xlu0 %1219
    %1221 = vrot.lane.b32.xlu0 %v248, 120
    %v1222 = vpop.permute.xlu0 %1221
    %v1223 = vsel %vm349, %v1218, 0
    %v1225 = vsel %vm349, %v1220, 0
    %v1227 = vsel %vm349, %v1222, 0
    %1229 = vmatprep.subr.mxu0 0.0
    %1230 = vmatpush1.xpose.msra.mxu0 %v1225
    %1231 = vmatprep.subr.mxu0 0.0
    %1232 = vmatpush1.xpose.msra.mxu0 %v1227
    %1233 = vmatprep.subr.mxu0 0.0
    %1234 = vmatpush1.xpose.msra.mxu0 0.0
    %1235 = vmatprep.subr.mxu0 0.0
    %1236 = vmatpush1.xpose.msra.mxu0 0.0
    %1237 = vmatprep.subr.mxu0 0.0
    %1238 = vmatpush1.xpose.msra.mxu0 0.0
    %1239 = vmatprep.subr.mxu0 0.0
    %1240 = vmatpush1.xpose.msra.mxu0 0.0
    %1241 = vmatprep.subr.mxu0 0.0
    %1242 = vmatpush1.xpose.msra.mxu0 0.0
    %1243 = vmatprep.subr.mxu0 0.0
    %1244 = vmatpush1.xpose.msra.mxu0 0.0
    %1245 = vmatprep.subr.mxu0 0.0
    %1246 = vmatpush1.xpose.msra.mxu0 0.0
    %1247 = vmatprep.subr.mxu0 0.0
    %1248 = vmatpush1.xpose.msra.mxu0 0.0
    %1249 = vmatprep.subr.mxu0 0.0
    %1250 = vmatpush1.xpose.msra.mxu0 0.0
    %1251 = vmatprep.subr.mxu0 0.0
    %1252 = vmatpush1.xpose.msra.mxu0 0.0
    %1253 = vmatprep.subr.mxu0 0.0
    %1254 = vmatpush1.xpose.msra.mxu0 0.0
    %1255 = vmatprep.subr.mxu0 0.0
    %1256 = vmatpush1.xpose.msra.mxu0 0.0
    %1257 = vmatprep.subr.mxu0 0.0
    %1258 = vmatpush1.xpose.msra.mxu0 0.0
    %1259 = vmatprep.subr.mxu0 0.0
    %1260 = vmatpush1.xpose.msra.mxu0 0.0
    %1261 = vmatprep.subr.mxu0 0.0
    %1262 = vmatpush1.xpose.msra.mxu0 0.0
    %1263 = vmatprep.subr.mxu0 0.0
    %1264 = vmatpush1.xpose.msra.mxu0 0.0
    %1265 = vmatprep.subr.mxu0 0.0
    %1266 = vmatpush1.xpose.msra.mxu0 0.0
    %1267 = vmatprep.subr.mxu0 0.0
    %1268 = vmatpush1.xpose.msra.mxu0 0.0
    %1269 = vmatprep.subr.mxu0 0.0
    %1270 = vmatpush1.xpose.msra.mxu0 0.0
    %1271 = vmatprep.subr.mxu0 0.0
    %1272 = vmatpush1.xpose.msra.mxu0 0.0
    %1273 = vmatprep.subr.mxu0 0.0
    %1274 = vmatpush1.xpose.msra.mxu0 0.0
    %1275 = vmatprep.subr.mxu0 0.0
    %1276 = vmatpush1.xpose.msra.mxu0 0.0
    %1277 = vmatprep.subr.mxu0 0.0
    %1278 = vmatpush1.xpose.msra.mxu0 0.0
    %1279 = vmatprep.subr.mxu0 0.0
    %1280 = vmatpush1.xpose.msra.mxu0 0.0
    %1281 = vmatprep.subr.mxu0 0.0
    %1282 = vmatpush1.xpose.msra.mxu0 0.0
    %1283 = vmatprep.subr.mxu0 0.0
    %1284 = vmatpush1.xpose.msra.mxu0 0.0
    %1285 = vmatprep.subr.mxu0 0.0
    %1286 = vmatpush1.xpose.msra.mxu0 0.0
    %1287 = vmatprep.subr.mxu0 0.0
    %1288 = vmatpush1.xpose.msra.mxu0 0.0
    %1289 = vmatprep.subr.mxu0 0.0
    %1290 = vmatpush1.xpose.msra.mxu0 0.0
    %1291 = vmatprep.subr.mxu0 0.0
    %1292 = vmatpush1.xpose.msra.mxu0 0.0
    %1293 = vmatprep.mubr.f32.mxu0 0.0
    %1294 = vmatmul.mubr.f32.gmra.mrb[0].mxu0 %v1223
    %v1295 = vpop.f32.mrb[0].mxu0
    %v1296 = vadd.f32 0.0, %v1295
    %v1297 = vpop.f32.mrb[0].mxu0
    %1298 = vdwg.mxu0
    %v1299 = vsel %vm429, %v1296, -inf
    %1300 = vmax.xlane.f32.xlu0 %v1299
    %v1301 = vpop.xlane.xlu0 %1300
    %v1302 = vsub.f32 %v1296, %v1301
    %v1303 = vmul.f32 %v1302, 1.442695
    %v1304 = vpow.pop %v1303
    %v1305 = vsel %vm429, %v1304, 0.0
    %1306 = vadd.xlane.f32.xlu0 %v1305
    %v1307 = vpop.xlane.xlu0 %1306
    %v1308 = vrcp.pop %v1307
    %v1309 = vmul.f32 %v1304, %v1308
    %v1310 = vadd.f32 %v1143, %v1309
    %1313 = vrot.lane.b32.xlu0 %v341, 120
    %v1314 = vpop.permute.xlu0 %1313
    %1315 = vrot.lane.b32.xlu0 %v346, 120
    %v1316 = vpop.permute.xlu0 %1315
    %v1320 = vsel %vm429, %v1309, 0
    %1322 = vmatprep.subr.mxu0 0.0
    %1323 = vmatpush1.msra.mxu0 %v1314
    %1324 = vmatprep.subr.mxu0 0.0
    %1325 = vmatpush1.msra.mxu0 %v1316
    %1326 = vmatprep.subr.mxu0 0.0
    %1327 = vmatpush1.msra.mxu0 0.0
    %1328 = vmatprep.subr.mxu0 0.0
    %1329 = vmatpush1.msra.mxu0 0.0
    %1330 = vmatprep.subr.mxu0 0.0
    %1331 = vmatpush1.msra.mxu0 0.0
    %1332 = vmatprep.subr.mxu0 0.0
    %1333 = vmatpush1.msra.mxu0 0.0
    %1334 = vmatprep.subr.mxu0 0.0
    %1335 = vmatpush1.msra.mxu0 0.0
    %1336 = vmatprep.subr.mxu0 0.0
    %1337 = vmatpush1.msra.mxu0 0.0
    %1338 = vmatprep.subr.mxu0 0.0
    %1339 = vmatpush1.msra.mxu0 0.0
    %1340 = vmatprep.subr.mxu0 0.0
    %1341 = vmatpush1.msra.mxu0 0.0
    %1342 = vmatprep.subr.mxu0 0.0
    %1343 = vmatpush1.msra.mxu0 0.0
    %1344 = vmatprep.subr.mxu0 0.0
    %1345 = vmatpush1.msra.mxu0 0.0
    %1346 = vmatprep.subr.mxu0 0.0
    %1347 = vmatpush1.msra.mxu0 0.0
    %1348 = vmatprep.subr.mxu0 0.0
    %1349 = vmatpush1.msra.mxu0 0.0
    %1350 = vmatprep.subr.mxu0 0.0
    %1351 = vmatpush1.msra.mxu0 0.0
    %1352 = vmatprep.subr.mxu0 0.0
    %1353 = vmatpush1.msra.mxu0 0.0
    %1354 = vmatprep.subr.mxu0 0.0
    %1355 = vmatpush1.msra.mxu0 0.0
    %1356 = vmatprep.subr.mxu0 0.0
    %1357 = vmatpush1.msra.mxu0 0.0
    %1358 = vmatprep.subr.mxu0 0.0
    %1359 = vmatpush1.msra.mxu0 0.0
    %1360 = vmatprep.subr.mxu0 0.0
    %1361 = vmatpush1.msra.mxu0 0.0
    %1362 = vmatprep.subr.mxu0 0.0
    %1363 = vmatpush1.msra.mxu0 0.0
    %1364 = vmatprep.subr.mxu0 0.0
    %1365 = vmatpush1.msra.mxu0 0.0
    %1366 = vmatprep.subr.mxu0 0.0
    %1367 = vmatpush1.msra.mxu0 0.0
    %1368 = vmatprep.subr.mxu0 0.0
    %1369 = vmatpush1.msra.mxu0 0.0
    %1370 = vmatprep.subr.mxu0 0.0
    %1371 = vmatpush1.msra.mxu0 0.0
    %1372 = vmatprep.subr.mxu0 0.0
    %1373 = vmatpush1.msra.mxu0 0.0
    %1374 = vmatprep.subr.mxu0 0.0
    %1375 = vmatpush1.msra.mxu0 0.0
    %1376 = vmatprep.subr.mxu0 0.0
    %1377 = vmatpush1.msra.mxu0 0.0
    %1378 = vmatprep.subr.mxu0 0.0
    %1379 = vmatpush1.msra.mxu0 0.0
    %1380 = vmatprep.subr.mxu0 0.0
    %1381 = vmatpush1.msra.mxu0 0.0
    %1382 = vmatprep.subr.mxu0 0.0
    %1383 = vmatpush1.msra.mxu0 0.0
    %1384 = vmatprep.subr.mxu0 0.0
    %1385 = vmatpush1.msra.mxu0 0.0
    %1386 = vmatprep.mubr.f32.mxu0 0.0
    %1387 = vmatmul.mubr.f32.gmra.mrb[0].mxu0 %v1320
    %v1388 = vpop.f32.mrb[0].mxu0
    %v1389 = vadd.f32 0.0, %v1388
    %v1390 = vpop.f32.mrb[0].mxu0
    %1391 = vdwg.mxu0
    %1392 = vrot.lane.b32.xlu0 %v139, 112
    %v1393 = vpop.permute.xlu0 %1392
    %1394 = vrot.lane.b32.xlu0 %v243, 112
    %v1395 = vpop.permute.xlu0 %1394
    %1396 = vrot.lane.b32.xlu0 %v248, 112
    %v1397 = vpop.permute.xlu0 %1396
    %v1398 = vsel %vm349, %v1393, 0
    %v1400 = vsel %vm349, %v1395, 0
    %v1402 = vsel %vm349, %v1397, 0
    %1404 = vmatprep.subr.mxu0 0.0
    %1405 = vmatpush1.xpose.msra.mxu0 %v1400
    %1406 = vmatprep.subr.mxu0 0.0
    %1407 = vmatpush1.xpose.msra.mxu0 %v1402
    %1408 = vmatprep.subr.mxu0 0.0
    %1409 = vmatpush1.xpose.msra.mxu0 0.0
    %1410 = vmatprep.subr.mxu0 0.0
    %1411 = vmatpush1.xpose.msra.mxu0 0.0
    %1412 = vmatprep.subr.mxu0 0.0
    %1413 = vmatpush1.xpose.msra.mxu0 0.0
    %1414 = vmatprep.subr.mxu0 0.0
    %1415 = vmatpush1.xpose.msra.mxu0 0.0
    %1416 = vmatprep.subr.mxu0 0.0
    %1417 = vmatpush1.xpose.msra.mxu0 0.0
    %1418 = vmatprep.subr.mxu0 0.0
    %1419 = vmatpush1.xpose.msra.mxu0 0.0
    %1420 = vmatprep.subr.mxu0 0.0
    %1421 = vmatpush1.xpose.msra.mxu0 0.0
    %1422 = vmatprep.subr.mxu0 0.0
    %1423 = vmatpush1.xpose.msra.mxu0 0.0
    %1424 = vmatprep.subr.mxu0 0.0
    %1425 = vmatpush1.xpose.msra.mxu0 0.0
    %1426 = vmatprep.subr.mxu0 0.0
    %1427 = vmatpush1.xpose.msra.mxu0 0.0
    %1428 = vmatprep.subr.mxu0 0.0
    %1429 = vmatpush1.xpose.msra.mxu0 0.0
    %1430 = vmatprep.subr.mxu0 0.0
    %1431 = vmatpush1.xpose.msra.mxu0 0.0
    %1432 = vmatprep.subr.mxu0 0.0
    %1433 = vmatpush1.xpose.msra.mxu0 0.0
    %1434 = vmatprep.subr.mxu0 0.0
    %1435 = vmatpush1.xpose.msra.mxu0 0.0
    %1436 = vmatprep.subr.mxu0 0.0
    %1437 = vmatpush1.xpose.msra.mxu0 0.0
    %1438 = vmatprep.subr.mxu0 0.0
    %1439 = vmatpush1.xpose.msra.mxu0 0.0
    %1440 = vmatprep.subr.mxu0 0.0
    %1441 = vmatpush1.xpose.msra.mxu0 0.0
    %1442 = vmatprep.subr.mxu0 0.0
    %1443 = vmatpush1.xpose.msra.mxu0 0.0
    %1444 = vmatprep.subr.mxu0 0.0
    %1445 = vmatpush1.xpose.msra.mxu0 0.0
    %1446 = vmatprep.subr.mxu0 0.0
    %1447 = vmatpush1.xpose.msra.mxu0 0.0
    %1448 = vmatprep.subr.mxu0 0.0
    %1449 = vmatpush1.xpose.msra.mxu0 0.0
    %1450 = vmatprep.subr.mxu0 0.0
    %1451 = vmatpush1.xpose.msra.mxu0 0.0
    %1452 = vmatprep.subr.mxu0 0.0
    %1453 = vmatpush1.xpose.msra.mxu0 0.0
    %1454 = vmatprep.subr.mxu0 0.0
    %1455 = vmatpush1.xpose.msra.mxu0 0.0
    %1456 = vmatprep.subr.mxu0 0.0
    %1457 = vmatpush1.xpose.msra.mxu0 0.0
    %1458 = vmatprep.subr.mxu0 0.0
    %1459 = vmatpush1.xpose.msra.mxu0 0.0
    %1460 = vmatprep.subr.mxu0 0.0
    %1461 = vmatpush1.xpose.msra.mxu0 0.0
    %1462 = vmatprep.subr.mxu0 0.0
    %1463 = vmatpush1.xpose.msra.mxu0 0.0
    %1464 = vmatprep.subr.mxu0 0.0
    %1465 = vmatpush1.xpose.msra.mxu0 0.0
    %1466 = vmatprep.subr.mxu0 0.0
    %1467 = vmatpush1.xpose.msra.mxu0 0.0
    %1468 = vmatprep.mubr.f32.mxu0 0.0
    %1469 = vmatmul.mubr.f32.gmra.mrb[0].mxu0 %v1398
    %v1470 = vpop.f32.mrb[0].mxu0
    %v1471 = vadd.f32 0.0, %v1470
    %v1472 = vpop.f32.mrb[0].mxu0
    %1473 = vdwg.mxu0
    %v1474 = vsel %vm429, %v1471, -inf
    %1475 = vmax.xlane.f32.xlu0 %v1474
    %v1476 = vpop.xlane.xlu0 %1475
    %v1477 = vsub.f32 %v1471, %v1476
    %v1478 = vmul.f32 %v1477, 1.442695
    %v1479 = vpow.pop %v1478
    %v1480 = vsel %vm429, %v1479, 0.0
    %1481 = vadd.xlane.f32.xlu0 %v1480
    %v1482 = vpop.xlane.xlu0 %1481
    %v1483 = vrcp.pop %v1482
    %v1484 = vmul.f32 %v1479, %v1483
    %v1485 = vadd.f32 %v1310, %v1484
    %1486 = vrot.lane.b32.xlu0 %v341, 112
    %v1487 = vpop.permute.xlu0 %1486
    %1488 = vrot.lane.b32.xlu0 %v346, 112
    %v1489 = vpop.permute.xlu0 %1488
    %v1493 = vsel %vm429, %v1484, 0
    %1495 = vmatprep.subr.mxu0 0.0
    %1496 = vmatpush1.msra.mxu0 %v1487
    %1497 = vmatprep.subr.mxu0 0.0
    %1498 = vmatpush1.msra.mxu0 %v1489
    %1499 = vmatprep.subr.mxu0 0.0
    %1500 = vmatpush1.msra.mxu0 0.0
    %1501 = vmatprep.subr.mxu0 0.0
    %1502 = vmatpush1.msra.mxu0 0.0
    %1503 = vmatprep.subr.mxu0 0.0
    %1504 = vmatpush1.msra.mxu0 0.0
    %1505 = vmatprep.subr.mxu0 0.0
    %1506 = vmatpush1.msra.mxu0 0.0
    %1507 = vmatprep.subr.mxu0 0.0
    %1508 = vmatpush1.msra.mxu0 0.0
    %1509 = vmatprep.subr.mxu0 0.0
    %1510 = vmatpush1.msra.mxu0 0.0
    %1511 = vmatprep.subr.mxu0 0.0
    %1512 = vmatpush1.msra.mxu0 0.0
    %1513 = vmatprep.subr.mxu0 0.0
    %1514 = vmatpush1.msra.mxu0 0.0
    %1515 = vmatprep.subr.mxu0 0.0
    %1516 = vmatpush1.msra.mxu0 0.0
    %1517 = vmatprep.subr.mxu0 0.0
    %1518 = vmatpush1.msra.mxu0 0.0
    %1519 = vmatprep.subr.mxu0 0.0
    %1520 = vmatpush1.msra.mxu0 0.0
    %1521 = vmatprep.subr.mxu0 0.0
    %1522 = vmatpush1.msra.mxu0 0.0
    %1523 = vmatprep.subr.mxu0 0.0
    %1524 = vmatpush1.msra.mxu0 0.0
    %1525 = vmatprep.subr.mxu0 0.0
    %1526 = vmatpush1.msra.mxu0 0.0
    %1527 = vmatprep.subr.mxu0 0.0
    %1528 = vmatpush1.msra.mxu0 0.0
    %1529 = vmatprep.subr.mxu0 0.0
    %1530 = vmatpush1.msra.mxu0 0.0
    %1531 = vmatprep.subr.mxu0 0.0
    %1532 = vmatpush1.msra.mxu0 0.0
    %1533 = vmatprep.subr.mxu0 0.0
    %1534 = vmatpush1.msra.mxu0 0.0
    %1535 = vmatprep.subr.mxu0 0.0
    %1536 = vmatpush1.msra.mxu0 0.0
    %1537 = vmatprep.subr.mxu0 0.0
    %1538 = vmatpush1.msra.mxu0 0.0
    %1539 = vmatprep.subr.mxu0 0.0
    %1540 = vmatpush1.msra.mxu0 0.0
    %1541 = vmatprep.subr.mxu0 0.0
    %1542 = vmatpush1.msra.mxu0 0.0
    %1543 = vmatprep.subr.mxu0 0.0
    %1544 = vmatpush1.msra.mxu0 0.0
    %1545 = vmatprep.subr.mxu0 0.0
    %1546 = vmatpush1.msra.mxu0 0.0
    %1547 = vmatprep.subr.mxu0 0.0
    %1548 = vmatpush1.msra.mxu0 0.0
    %1549 = vmatprep.subr.mxu0 0.0
    %1550 = vmatpush1.msra.mxu0 0.0
    %1551 = vmatprep.subr.mxu0 0.0
    %1552 = vmatpush1.msra.mxu0 0.0
    %1553 = vmatprep.subr.mxu0 0.0
    %1554 = vmatpush1.msra.mxu0 0.0
    %1555 = vmatprep.subr.mxu0 0.0
    %1556 = vmatpush1.msra.mxu0 0.0
    %1557 = vmatprep.subr.mxu0 0.0
    %1558 = vmatpush1.msra.mxu0 0.0
    %1559 = vmatprep.mubr.f32.mxu0 0.0
    %1560 = vmatmul.mubr.f32.gmra.mrb[0].mxu0 %v1493
    %v1561 = vpop.f32.mrb[0].mxu0
    %v1562 = vadd.f32 0.0, %v1561
    %v1563 = vpop.f32.mrb[0].mxu0
    %1564 = vdwg.mxu0
    %1565 = vrot.lane.b32.xlu0 %v139, 104
    %v1566 = vpop.permute.xlu0 %1565
    %1567 = vrot.lane.b32.xlu0 %v243, 104
    %v1568 = vpop.permute.xlu0 %1567
    %1569 = vrot.lane.b32.xlu0 %v248, 104
    %v1570 = vpop.permute.xlu0 %1569
    %v1571 = vsel %vm349, %v1566, 0
    %v1573 = vsel %vm349, %v1568, 0
    %v1575 = vsel %vm349, %v1570, 0
    %1577 = vmatprep.subr.mxu0 0.0
    %1578 = vmatpush1.xpose.msra.mxu0 %v1573
    %1579 = vmatprep.subr.mxu0 0.0
    %1580 = vmatpush1.xpose.msra.mxu0 %v1575
    %1581 = vmatprep.subr.mxu0 0.0
    %1582 = vmatpush1.xpose.msra.mxu0 0.0
    %1583 = vmatprep.subr.mxu0 0.0
    %1584 = vmatpush1.xpose.msra.mxu0 0.0
    %1585 = vmatprep.subr.mxu0 0.0
    %1586 = vmatpush1.xpose.msra.mxu0 0.0
    %1587 = vmatprep.subr.mxu0 0.0
    %1588 = vmatpush1.xpose.msra.mxu0 0.0
    %1589 = vmatprep.subr.mxu0 0.0
    %1590 = vmatpush1.xpose.msra.mxu0 0.0
    %1591 = vmatprep.subr.mxu0 0.0
    %1592 = vmatpush1.xpose.msra.mxu0 0.0
    %1593 = vmatprep.subr.mxu0 0.0
    %1594 = vmatpush1.xpose.msra.mxu0 0.0
    %1595 = vmatprep.subr.mxu0 0.0
    %1596 = vmatpush1.xpose.msra.mxu0 0.0
    %1597 = vmatprep.subr.mxu0 0.0
    %1598 = vmatpush1.xpose.msra.mxu0 0.0
    %1599 = vmatprep.subr.mxu0 0.0
    %1600 = vmatpush1.xpose.msra.mxu0 0.0
    %1601 = vmatprep.subr.mxu0 0.0
    %1602 = vmatpush1.xpose.msra.mxu0 0.0
    %1603 = vmatprep.subr.mxu0 0.0
    %1604 = vmatpush1.xpose.msra.mxu0 0.0
    %1605 = vmatprep.subr.mxu0 0.0
    %1606 = vmatpush1.xpose.msra.mxu0 0.0
    %1607 = vmatprep.subr.mxu0 0.0
    %1608 = vmatpush1.xpose.msra.mxu0 0.0
    %1609 = vmatprep.subr.mxu0 0.0
    %1610 = vmatpush1.xpose.msra.mxu0 0.0
    %1611 = vmatprep.subr.mxu0 0.0
    %1612 = vmatpush1.xpose.msra.mxu0 0.0
    %1613 = vmatprep.subr.mxu0 0.0
    %1614 = vmatpush1.xpose.msra.mxu0 0.0
    %1615 = vmatprep.subr.mxu0 0.0
    %1616 = vmatpush1.xpose.msra.mxu0 0.0
    %1617 = vmatprep.subr.mxu0 0.0
    %1618 = vmatpush1.xpose.msra.mxu0 0.0
    %1619 = vmatprep.subr.mxu0 0.0
    %1620 = vmatpush1.xpose.msra.mxu0 0.0
    %1621 = vmatprep.subr.mxu0 0.0
    %1622 = vmatpush1.xpose.msra.mxu0 0.0
    %1623 = vmatprep.subr.mxu0 0.0
    %1624 = vmatpush1.xpose.msra.mxu0 0.0
    %1625 = vmatprep.subr.mxu0 0.0
    %1626 = vmatpush1.xpose.msra.mxu0 0.0
    %1627 = vmatprep.subr.mxu0 0.0
    %1628 = vmatpush1.xpose.msra.mxu0 0.0
    %1629 = vmatprep.subr.mxu0 0.0
    %1630 = vmatpush1.xpose.msra.mxu0 0.0
    %1631 = vmatprep.subr.mxu0 0.0
    %1632 = vmatpush1.xpose.msra.mxu0 0.0
    %1633 = vmatprep.subr.mxu0 0.0
    %1634 = vmatpush1.xpose.msra.mxu0 0.0
    %1635 = vmatprep.subr.mxu0 0.0
    %1636 = vmatpush1.xpose.msra.mxu0 0.0
    %1637 = vmatprep.subr.mxu0 0.0
    %1638 = vmatpush1.xpose.msra.mxu0 0.0
    %1639 = vmatprep.subr.mxu0 0.0
    %1640 = vmatpush1.xpose.msra.mxu0 0.0
    %1641 = vmatprep.mubr.f32.mxu0 0.0
    %1642 = vmatmul.mubr.f32.gmra.mrb[0].mxu0 %v1571
    %v1643 = vpop.f32.mrb[0].mxu0
    %v1644 = vadd.f32 0.0, %v1643
    %v1645 = vpop.f32.mrb[0].mxu0
    %1646 = vdwg.mxu0
    %v1647 = vsel %vm429, %v1644, -inf
    %1648 = vmax.xlane.f32.xlu0 %v1647
    %v1649 = vpop.xlane.xlu0 %1648
    %v1650 = vsub.f32 %v1644, %v1649
    %v1651 = vmul.f32 %v1650, 1.442695
    %v1652 = vpow.pop %v1651
    %v1653 = vsel %vm429, %v1652, 0.0
    %1654 = vadd.xlane.f32.xlu0 %v1653
    %v1655 = vpop.xlane.xlu0 %1654
    %v1656 = vrcp.pop %v1655
    %v1657 = vmul.f32 %v1652, %v1656
    %v1658 = vadd.f32 %v1485, %v1657
    %1659 = vrot.lane.b32.xlu0 %v341, 104
    %v1660 = vpop.permute.xlu0 %1659
    %1661 = vrot.lane.b32.xlu0 %v346, 104
    %v1662 = vpop.permute.xlu0 %1661
    %v1666 = vsel %vm429, %v1657, 0
    %1668 = vmatprep.subr.mxu0 0.0
    %1669 = vmatpush1.msra.mxu0 %v1660
    %1670 = vmatprep.subr.mxu0 0.0
    %1671 = vmatpush1.msra.mxu0 %v1662
    %1672 = vmatprep.subr.mxu0 0.0
    %1673 = vmatpush1.msra.mxu0 0.0
    %1674 = vmatprep.subr.mxu0 0.0
    %1675 = vmatpush1.msra.mxu0 0.0
    %1676 = vmatprep.subr.mxu0 0.0
    %1677 = vmatpush1.msra.mxu0 0.0
    %1678 = vmatprep.subr.mxu0 0.0
    %1679 = vmatpush1.msra.mxu0 0.0
    %1680 = vmatprep.subr.mxu0 0.0
    %1681 = vmatpush1.msra.mxu0 0.0
    %1682 = vmatprep.subr.mxu0 0.0
    %1683 = vmatpush1.msra.mxu0 0.0
    %1684 = vmatprep.subr.mxu0 0.0
    %1685 = vmatpush1.msra.mxu0 0.0
    %1686 = vmatprep.subr.mxu0 0.0
    %1687 = vmatpush1.msra.mxu0 0.0
    %1688 = vmatprep.subr.mxu0 0.0
    %1689 = vmatpush1.msra.mxu0 0.0
    %1690 = vmatprep.subr.mxu0 0.0
    %1691 = vmatpush1.msra.mxu0 0.0
    %1692 = vmatprep.subr.mxu0 0.0
    %1693 = vmatpush1.msra.mxu0 0.0
    %1694 = vmatprep.subr.mxu0 0.0
    %1695 = vmatpush1.msra.mxu0 0.0
    %1696 = vmatprep.subr.mxu0 0.0
    %1697 = vmatpush1.msra.mxu0 0.0
    %1698 = vmatprep.subr.mxu0 0.0
    %1699 = vmatpush1.msra.mxu0 0.0
    %1700 = vmatprep.subr.mxu0 0.0
    %1701 = vmatpush1.msra.mxu0 0.0
    %1702 = vmatprep.subr.mxu0 0.0
    %1703 = vmatpush1.msra.mxu0 0.0
    %1704 = vmatprep.subr.mxu0 0.0
    %1705 = vmatpush1.msra.mxu0 0.0
    %1706 = vmatprep.subr.mxu0 0.0
    %1707 = vmatpush1.msra.mxu0 0.0
    %1708 = vmatprep.subr.mxu0 0.0
    %1709 = vmatpush1.msra.mxu0 0.0
    %1710 = vmatprep.subr.mxu0 0.0
    %1711 = vmatpush1.msra.mxu0 0.0
    %1712 = vmatprep.subr.mxu0 0.0
    %1713 = vmatpush1.msra.mxu0 0.0
    %1714 = vmatprep.subr.mxu0 0.0
    %1715 = vmatpush1.msra.mxu0 0.0
    %1716 = vmatprep.subr.mxu0 0.0
    %1717 = vmatpush1.msra.mxu0 0.0
    %1718 = vmatprep.subr.mxu0 0.0
    %1719 = vmatpush1.msra.mxu0 0.0
    %1720 = vmatprep.subr.mxu0 0.0
    %1721 = vmatpush1.msra.mxu0 0.0
    %1722 = vmatprep.subr.mxu0 0.0
    %1723 = vmatpush1.msra.mxu0 0.0
    %1724 = vmatprep.subr.mxu0 0.0
    %1725 = vmatpush1.msra.mxu0 0.0
    %1726 = vmatprep.subr.mxu0 0.0
    %1727 = vmatpush1.msra.mxu0 0.0
    %1728 = vmatprep.subr.mxu0 0.0
    %1729 = vmatpush1.msra.mxu0 0.0
    %1730 = vmatprep.subr.mxu0 0.0
    %1731 = vmatpush1.msra.mxu0 0.0
    %1732 = vmatprep.mubr.f32.mxu0 0.0
    %1733 = vmatmul.mubr.f32.gmra.mrb[0].mxu0 %v1666
    %v1734 = vpop.f32.mrb[0].mxu0
    %v1735 = vadd.f32 0.0, %v1734
    %v1736 = vpop.f32.mrb[0].mxu0
    %1737 = vdwg.mxu0
    %1739 = vrot.lane.b32.xlu0 %v1389, 8
    %v1740 = vpop.permute.xlu0 %1739
    %1743 = vrot.lane.b32.xlu0 %v1562, 16
    %v1744 = vpop.permute.xlu0 %1743
    %1747 = vrot.lane.b32.xlu0 %v1735, 24
    %v1748 = vpop.permute.xlu0 %1747
    %v1750 = vsel %vm349, %v1214, %v1740
    %v1751 = vsel %vm429, %v1750, %v1744
    %v1752 = vsel %vm1050, %v1751, %v1748
    %v1753 = vmul.f32 %v1658, 0.25
    %v1754 = vld [vmem:[%s8] sm:$0xff]
    %v1755 = vld [vmem:[%s8 + $0x8] sm:$0xff]
    %v1756 = vld [vmem:[%s8 + $0x10] sm:$0xff]
    %v1757 = vld [vmem:[%s8 + $0x18] sm:$0xff]
    %v1758 = vld [vmem:[%s9] sm:$0x1]
    %v1760 = vlaneseq
    %v1761 = vshrl.u32 %v1760, 7
    %v1762 = vsub.s32 0, %v1761
    %v1763 = vrot.slane %v1758, %v1762
    %v1766 = vsel %vm56, %v1051, 0
    %v1769 = vsel %vm56, %v1752, 0
    %1771 = vmatprep.subr.mxu0 0.0
    %1772 = vmatpush1.msra.mxu0 %v1754
    %1773 = vmatprep.subr.mxu0 0.0
    %1774 = vmatpush1.msra.mxu0 %v1755
    %1775 = vmatprep.subr.mxu0 0.0
    %1776 = vmatpush1.msra.mxu0 %v1756
    %1777 = vmatprep.subr.mxu0 0.0
    %1778 = vmatpush1.msra.mxu0 %v1757
    %1779 = vmatprep.subr.mxu0 0.0
    %1780 = vmatpush1.msra.mxu0 0.0
    %1781 = vmatprep.subr.mxu0 0.0
    %1782 = vmatpush1.msra.mxu0 0.0
    %1783 = vmatprep.subr.mxu0 0.0
    %1784 = vmatpush1.msra.mxu0 0.0
    %1785 = vmatprep.subr.mxu0 0.0
    %1786 = vmatpush1.msra.mxu0 0.0
    %1787 = vmatprep.subr.mxu0 0.0
    %1788 = vmatpush1.msra.mxu0 0.0
    %1789 = vmatprep.subr.mxu0 0.0
    %1790 = vmatpush1.msra.mxu0 0.0
    %1791 = vmatprep.subr.mxu0 0.0
    %1792 = vmatpush1.msra.mxu0 0.0
    %1793 = vmatprep.subr.mxu0 0.0
    %1794 = vmatpush1.msra.mxu0 0.0
    %1795 = vmatprep.subr.mxu0 0.0
    %1796 = vmatpush1.msra.mxu0 0.0
    %1797 = vmatprep.subr.mxu0 0.0
    %1798 = vmatpush1.msra.mxu0 0.0
    %1799 = vmatprep.subr.mxu0 0.0
    %1800 = vmatpush1.msra.mxu0 0.0
    %1801 = vmatprep.subr.mxu0 0.0
    %1802 = vmatpush1.msra.mxu0 0.0
    %1803 = vmatprep.subr.mxu0 0.0
    %1804 = vmatpush1.msra.mxu0 0.0
    %1805 = vmatprep.subr.mxu0 0.0
    %1806 = vmatpush1.msra.mxu0 0.0
    %1807 = vmatprep.subr.mxu0 0.0
    %1808 = vmatpush1.msra.mxu0 0.0
    %1809 = vmatprep.subr.mxu0 0.0
    %1810 = vmatpush1.msra.mxu0 0.0
    %1811 = vmatprep.subr.mxu0 0.0
    %1812 = vmatpush1.msra.mxu0 0.0
    %1813 = vmatprep.subr.mxu0 0.0
    %1814 = vmatpush1.msra.mxu0 0.0
    %1815 = vmatprep.subr.mxu0 0.0
    %1816 = vmatpush1.msra.mxu0 0.0
    %1817 = vmatprep.subr.mxu0 0.0
    %1818 = vmatpush1.msra.mxu0 0.0
    %1819 = vmatprep.subr.mxu0 0.0
    %1820 = vmatpush1.msra.mxu0 0.0
    %1821 = vmatprep.subr.mxu0 0.0
    %1822 = vmatpush1.msra.mxu0 0.0
    %1823 = vmatprep.subr.mxu0 0.0
    %1824 = vmatpush1.msra.mxu0 0.0
    %1825 = vmatprep.subr.mxu0 0.0
    %1826 = vmatpush1.msra.mxu0 0.0
    %1827 = vmatprep.subr.mxu0 0.0
    %1828 = vmatpush1.msra.mxu0 0.0
    %1829 = vmatprep.subr.mxu0 0.0
    %1830 = vmatpush1.msra.mxu0 0.0
    %1831 = vmatprep.subr.mxu0 0.0
    %1832 = vmatpush1.msra.mxu0 0.0
    %1833 = vmatprep.subr.mxu0 0.0
    %1834 = vmatpush1.msra.mxu0 0.0
    %1835 = vmatprep.mubr.f32.mxu0 0.0
    %1836 = vmatmul.mubr.f32.gmra.mrb[0].mxu0 %v1766
    %v1837 = vpop.f32.mrb[0].mxu0
    %v1838 = vadd.f32 %v1763, %v1837
    %v1839 = vpop.f32.mrb[0].mxu0
    %1840 = vmatprep.mubr.f32.mxu0 0.0
    %1841 = vmatmul.mubr.f32.gmra.mrb[0].mxu0 %v1769
    %v1842 = vpop.f32.mrb[0].mxu0
    %v1843 = vadd.f32 %v1763, %v1842
    %v1844 = vpop.f32.mrb[0].mxu0
    %1845 = vdwg.mxu0
    %1846 = vst.msk [vmem:[#allocation2] sm:$0xff] %vm56, %v1838
    %1847 = vst.msk [vmem:[#allocation2 + $0x8] sm:$0xff] %vm56, %v1843
    %1848 = vst.msk [vmem:[#allocation4] sm:$0xff] %vm429, %v1052
    %1849 = vst.msk [vmem:[#allocation4 + $0x8] sm:$0xff] %vm429, %v1753
    // Predicated region
    $region42: #{tpu_custom_call.1} parent=1 // pred_check
      _
    $region43: #{tpu_custom_call.1} parent=1 // pred_check_branch
      %1851 = sbr.rel (0) target = $region45
    $region44: #{tpu_custom_call.1} parent=1 // pred_region
      %s1853 = ssub.s32 256, 256
      %1854 = vsyncadd [#allocation3], %s1853
      %s1855 = sshll.u32 [#allocation2], 4
      %s1856 = int_to_ptr.vmem [resolvable:$true] %s1855
      %1861 = dma.vmem_to_hbm [thread:$0]  %s1856, 256, %s10, [#allocation3], 128, 128, 8
    $region45: #{tpu_custom_call.1} parent=1 // pred_fallthru
      _
    // Predicated region
    $region46: #{tpu_custom_call.1} parent=1 // pred_check
      _
    $region47: #{tpu_custom_call.1} parent=1 // pred_check_branch
      %1863 = sbr.rel (0) target = $region49
    $region48: #{tpu_custom_call.1} parent=1 // pred_region
      %s1865 = ssub.s32 256, 256
      %1866 = vsyncadd [#allocation5], %s1865
      %s1867 = sshll.u32 [#allocation4], 4
      %s1868 = int_to_ptr.vmem [resolvable:$true] %s1867
      %1873 = dma.vmem_to_hbm [thread:$0]  %s1868, 256, %s11, [#allocation5], 128, 128, 8
    $region49: #{tpu_custom_call.1} parent=1 // pred_fallthru
      _
    // Predicated region
    $region50: #{tpu_custom_call.1} parent=1 // pred_check
      _
    $region51: #{tpu_custom_call.1} parent=1 // pred_check_branch
      %1875 = sbr.rel (0) target = $region53
    $region52: #{tpu_custom_call.1} parent=1 // pred_region
      %1876 = dma.done [#allocation3], 256
    $region53: #{tpu_custom_call.1} parent=1 // pred_fallthru
      _
    // Predicated region
    $region54: #{tpu_custom_call.1} parent=1 // pred_check
      _
    $region55: #{tpu_custom_call.1} parent=1 // pred_check_branch
      %1878 = sbr.rel (0) target = $region57
    $region56: #{tpu_custom_call.1} parent=1 // pred_region
      %1879 = dma.done [#allocation5], 256
    $region57: #{tpu_custom_call.1} parent=1 // pred_fallthru
      _
    %1880 = vsyncpa [#allocation3], 1
    %1881 = vsyncpa [#allocation5], 1

</llo_original>
